<compile_context>
chip_gen: v7x
topology: tpu7x:2x2x1
jax: 0.10.0
libtpu: 0.0.40
codegen_flags: <defaults>
</compile_context>

<pallas_src>
import functools

import jax
import jax.numpy as jnp
from jax.experimental import pallas as pl
from jax.experimental.pallas import tpu as pltpu


def _round_up(v, m):
    return ((v + m - 1) // m) * m


# ----------------------------------------------------------------------------
# Fused Pallas kernel: entire forward pass for one image per grid step
# ----------------------------------------------------------------------------
def _fused_effnet_kernel(
    patches_ref,    # (HP*WP, K) stem patches over the zero-padded output grid
    stem_w_ref,     # (K, C)     1x1 conv (+bias) and stem bias folded in
    dw_w_ref,       # (9, C)     depthwise 3x3 taps
    dw_scale_ref,   # (1, C)     folded BN scale
    dw_shift_ref,   # (1, C)     folded BN shift
    se1_w_ref,      # (C, C//4)
    se1_b_ref,      # (1, C//4)
    se2_w_ref,      # (C//4, C)
    se2_b_ref,      # (1, C)
    ph_w_ref,       # (C, F)     linear 1x1 project folded into head 1x1
    ph_b_ref,       # (1, F)
    cls_w_ref,      # (F, T)
    cls_b_ref,      # (1, T)
    out_ref,        # (1, T)
    *, ho, wo, wp,
):
    f32 = jnp.float32
    c = dw_w_ref.shape[1]
    hp = ho + 2

    # ---- stem: 3x3/s2 conv (1x1 conv, its bias, BN and stem bias folded) + SiLU
    # Border rows of the padded output grid have all-zero patch rows, so their
    # pre-activation is exactly 0 and SiLU(0) == 0: the GEMM directly emits the
    # zero-padded activation the depthwise 3x3 reads (no scratch, no masked
    # offset stores).
    s = jnp.dot(patches_ref[...], stem_w_ref[...], preferred_element_type=f32)
    s = s * jax.nn.sigmoid(s)                       # (hp*wp, c)
    sp = s.reshape(hp, wp, c)                       # wp is a multiple of 8

    # ---- depthwise 3x3 + BN + SiLU: 9 shifted MACs on the padded tile ----------
    w_dw = dw_w_ref[...]                            # (9, c)
    acc = sp[0:ho, 0:wo, :] * w_dw[0:1, :].reshape(1, 1, c)
    for dy in range(3):
        for dx in range(3):
            if dy == 0 and dx == 0:
                continue
            t = dy * 3 + dx
            acc = acc + sp[dy:dy + ho, dx:dx + wo, :] * w_dw[t:t + 1, :].reshape(1, 1, c)
    yd = acc * dw_scale_ref[...].reshape(1, 1, c) + dw_shift_ref[...].reshape(1, 1, c)
    d = (yd * jax.nn.sigmoid(yd)).reshape(ho * wo, c)

    # ---- squeeze-excite (tiny FCs kept in-kernel; no extra launches) -----------
    pooled = jnp.mean(d, axis=0, keepdims=True)     # (1, c)
    z = jnp.dot(pooled, se1_w_ref[...], preferred_element_type=f32) + se1_b_ref[...]
    z = z * jax.nn.sigmoid(z)                       # (1, c//4)
    g = jax.nn.sigmoid(
        jnp.dot(z, se2_w_ref[...], preferred_element_type=f32) + se2_b_ref[...])
    gated = d * g                                   # (ho*wo, c) * (1, c)

    # ---- project (folded) + head 1x1 + SiLU ------------------------------------
    h = jnp.dot(gated, ph_w_ref[...], preferred_element_type=f32) + ph_b_ref[...]
    h = h * jax.nn.sigmoid(h)                       # (ho*wo, F)

    # ---- global average pool + classifier --------------------------------------
    feat = jnp.mean(h, axis=0, keepdims=True)       # (1, F)
    logits = jnp.dot(feat, cls_w_ref[...], preferred_element_type=f32) + cls_b_ref[...]
    out_ref[...] = logits.astype(out_ref.dtype)


# ----------------------------------------------------------------------------
# Wrapper: layout-only JAX glue (transpose / pad / slice / concat) + pallas_call
# ----------------------------------------------------------------------------
def custom_efficientnet_forward(params, x_nchw):
    n, cin, h, w = x_nchw.shape
    ho = (h + 2 - 3) // 2 + 1
    wo = (w + 2 - 3) // 2 + 1
    hp, wp = ho + 2, _round_up(wo + 2, 8)
    c = params["dw_w"].shape[1]
    nf = params["ph_w"].shape[1]
    t_out = params["cls_w"].shape[1]
    kdim = params["stem_wf"].shape[0]               # 9*(cin+1) + 1

    # NCHW -> NHWC; channel `cin` is a mask channel carrying the 1x1-conv bias
    # (0 in the stem's zero-padded halo).
    x = jnp.transpose(x_nchw, (0, 2, 3, 1)).astype(jnp.float32)
    xa = jnp.concatenate([x, jnp.ones((n, h, w, 1), jnp.float32)], axis=-1)
    xa = jnp.pad(xa, ((0, 0), (1, 1), (1, 1), (0, 0)))
    taps = [xa[:, dy:dy + 2 * ho - 1:2, dx:dx + 2 * wo - 1:2, :]
            for dy in range(3) for dx in range(3)]
    # last all-ones column feeds the stem-bias row of the folded weight
    pat = jnp.concatenate(taps + [jnp.ones((n, ho, wo, 1), jnp.float32)], axis=-1)
    # zero-pad the OUTPUT grid so the stem GEMM emits the zero-padded activation
    # the depthwise 3x3 needs; round the width up to wp for tile-aligned reshapes.
    pat = jnp.pad(pat, ((0, 0), (1, 1), (1, wp - wo - 1), (0, 0)))
    patches = pat.reshape(n, hp * wp, kdim)

    weights = (params["stem_wf"], params["dw_w"], params["dw_scale"],
               params["dw_shift"], params["se1_w"], params["se1_b"],
               params["se2_w"], params["se2_b"], params["ph_w"], params["ph_b"],
               params["cls_w"], params["cls_b"])

    def _rep_spec(arr):
        return pl.BlockSpec(arr.shape, lambda b: (0,) * arr.ndim)

    m = hp * wp
    se_h = params["se1_w"].shape[1]
    flops = n * (2 * m * kdim * c + 2 * 9 * ho * wo * c
                 + 2 * c * se_h + 2 * se_h * c
                 + 2 * ho * wo * c * nf + 2 * nf * t_out)
    transcendentals = n * (m * c + ho * wo * (c + nf) + se_h + c)
    bytes_accessed = 4 * (int(patches.size) + sum(int(a.size) for a in weights)
                          + n * t_out)

    out = pl.pallas_call(
        functools.partial(_fused_effnet_kernel, ho=ho, wo=wo, wp=wp),
        out_shape=jax.ShapeDtypeStruct((n, 1, t_out), jnp.float32),
        grid=(n,),
        in_specs=[pl.BlockSpec((None, m, kdim), lambda b: (b, 0, 0))]
                 + [_rep_spec(a) for a in weights],
        out_specs=pl.BlockSpec((None, 1, t_out), lambda b: (b, 0, 0)),
        compiler_params=pltpu.CompilerParams(dimension_semantics=("parallel",)),
        cost_estimate=pl.CostEstimate(flops=flops,
                                      transcendentals=transcendentals,
                                      bytes_accessed=bytes_accessed),
    )(patches, *weights)
    return out.reshape(n, t_out)


# ----------------------------------------------------------------------------
# Parameters: deterministic synthetic init (BN folded), then algebraic folding
# ----------------------------------------------------------------------------
def init_params(key, target_size=5):
    ks = jax.random.split(key, 26)

    def nrm(k, shape, s=0.1):
        return jax.random.normal(k, shape, jnp.float32) * s

    def fold_bn(kg, kb, km, kv, cout):
        gamma = 1.0 + nrm(kg, (cout,))
        beta = nrm(kb, (cout,))
        mean = nrm(km, (cout,))
        var = jnp.abs(nrm(kv, (cout,))) + 1.0
        scale = gamma / jnp.sqrt(var + 1e-5)
        shift = beta - mean * scale
        return scale, shift

    p = {}
    # nn.Conv2d(4, 3, 1): per-pixel matmul weight + bias
    p["conv1_w"] = nrm(ks[0], (4, 3))
    p["conv1_b"] = nrm(ks[1], (1, 3))
    # stem conv 3x3/s2, 3 -> 32, BN folded, SiLU
    sc, sh = fold_bn(ks[3], ks[4], ks[5], ks[6], 32)
    p["stem_w"] = nrm(ks[2], (9 * 3, 32)) * sc[None, :]
    p["stem_b"] = sh[None, :]
    # MBConv depthwise 3x3 (32 ch) + BN + SiLU
    p["dw_w"] = nrm(ks[7], (9, 32))
    dsc, dsh = fold_bn(ks[8], ks[9], ks[10], ks[11], 32)
    p["dw_scale"] = dsc[None, :]
    p["dw_shift"] = dsh[None, :]
    # Squeeze-Excite 32 -> 8 -> 32
    p["se1_w"] = nrm(ks[12], (32, 8))
    p["se1_b"] = nrm(ks[13], (1, 8))
    p["se2_w"] = nrm(ks[14], (8, 32))
    p["se2_b"] = nrm(ks[15], (1, 32))
    # project 1x1 32 -> 16 (linear, BN folded)
    psc, psh = fold_bn(ks[17], ks[18], ks[19], ks[20], 16)
    p["proj_w"] = nrm(ks[16], (32, 16)) * psc[None, :]
    p["proj_b"] = psh[None, :]
    # head 1x1 16 -> 64 (= n_features), SiLU
    p["head_w"] = nrm(ks[21], (16, 64))
    p["head_b"] = nrm(ks[22], (1, 64))
    # classifier nn.Linear(64, target_size)
    p["cls_w"] = nrm(ks[23], (64, target_size))
    p["cls_b"] = nrm(ks[24], (1, target_size))
    return p


def fold_params(raw):
    """Fold adjacent linear stages once at weight-prep time (exact)."""
    prec = jax.lax.Precision.HIGHEST
    # 1x1 conv weight + bias (via the mask channel) folded into the stem taps.
    w1a = jnp.concatenate([raw["conv1_w"], raw["conv1_b"]], axis=0)      # (cin+1, 3)
    tap_blocks = [jnp.matmul(w1a, raw["stem_w"][3 * t:3 * (t + 1), :], precision=prec)
                  for t in range(9)]
    # stem bias becomes an extra weight row, fed by the all-ones patch column.
    stem_wf = jnp.concatenate(tap_blocks + [raw["stem_b"]], axis=0)      # (9*(cin+1)+1, 32)
    # linear 1x1 project folded into the head 1x1 conv.
    ph_w = jnp.matmul(raw["proj_w"], raw["head_w"], precision=prec)
    ph_b = jnp.matmul(raw["proj_b"], raw["head_w"], precision=prec) + raw["head_b"]
    return {
        "stem_wf": stem_wf,
        "dw_w": raw["dw_w"], "dw_scale": raw["dw_scale"], "dw_shift": raw["dw_shift"],
        "se1_w": raw["se1_w"], "se1_b": raw["se1_b"],
        "se2_w": raw["se2_w"], "se2_b": raw["se2_b"],
        "ph_w": ph_w, "ph_b": ph_b,
        "cls_w": raw["cls_w"], "cls_b": raw["cls_b"],
    }


# ----------------------------------------------------------------------------
# Pure-JAX reference (unfused, raw parameters) for correctness checking
# ----------------------------------------------------------------------------
def reference_forward(raw, x_nchw):
    mm = functools.partial(jnp.matmul, precision=jax.lax.Precision.HIGHEST)
    n, cin, h, w = x_nchw.shape
    ho = (h + 2 - 3) // 2 + 1
    wo = (w + 2 - 3) // 2 + 1
    x = jnp.transpose(x_nchw, (0, 2, 3, 1)).astype(jnp.float32)
    y = (mm(x.reshape(-1, cin), raw["conv1_w"]) + raw["conv1_b"]).reshape(n, h, w, -1)
    yp = jnp.pad(y, ((0, 0), (1, 1), (1, 1), (0, 0)))
    cols = [yp[:, dy:dy + 2 * ho - 1:2, dx:dx + 2 * wo - 1:2, :]
            for dy in range(3) for dx in range(3)]
    p = jnp.concatenate(cols, axis=-1).reshape(n * ho * wo, -1)
    s = mm(p, raw["stem_w"]) + raw["stem_b"]
    s = (s * jax.nn.sigmoid(s)).reshape(n, ho, wo, -1)
    sp = jnp.pad(s, ((0, 0), (1, 1), (1, 1), (0, 0)))
    acc = 0.0
    for dy in range(3):
        for dx in range(3):
            acc = acc + sp[:, dy:dy + ho, dx:dx + wo, :] * \
                raw["dw_w"][dy * 3 + dx].reshape(1, 1, 1, -1)
    yd = acc * raw["dw_scale"].reshape(1, 1, 1, -1) + raw["dw_shift"].reshape(1, 1, 1, -1)
    d = (yd * jax.nn.sigmoid(yd)).reshape(n, ho * wo, -1)
    pooled = d.mean(axis=1)
    z = mm(pooled, raw["se1_w"]) + raw["se1_b"]
    z = z * jax.nn.sigmoid(z)
    g = jax.nn.sigmoid(mm(z, raw["se2_w"]) + raw["se2_b"])
    gated = d * g[:, None, :]
    pr = mm(gated.reshape(n * ho * wo, -1), raw["proj_w"]) + raw["proj_b"]
    hd = mm(pr, raw["head_w"]) + raw["head_b"]
    hd = hd * jax.nn.sigmoid(hd)
    feat = hd.reshape(n, ho * wo, -1).mean(axis=1)
    return mm(feat, raw["cls_w"]) + raw["cls_b"]


# ----------------------------------------------------------------------------
if __name__ == "__main__":
    key = jax.random.PRNGKey(0)
    kx, kp = jax.random.split(key)
    x = jax.random.normal(kx, (2, 4, 16, 16), jnp.float32)   # NCHW input
    raw = init_params(kp, target_size=5)
    params = fold_params(raw)

    fwd = jax.jit(custom_efficientnet_forward)
    out = jax.block_until_ready(fwd(params, x))
    assert out.shape == (2, 5), out.shape
    assert bool(jnp.all(jnp.isfinite(out)))

    ref = reference_forward(raw, x)
    assert jnp.allclose(out, ref, rtol=1e-2, atol=1e-2), (out, ref)
    print("KERNEL_OK")
</pallas_src>

<mosaic_0001>
module attributes {stable_mosaic.version = 11 : i64} {
  func.func @_fused_effnet_kernel(%arg0: i32, %arg1: memref<1x160x46xf32, #tpu.memory_space<vmem>>, %arg2: memref<46x32xf32, #tpu.memory_space<vmem>>, %arg3: memref<9x32xf32, #tpu.memory_space<vmem>>, %arg4: memref<1x32xf32, #tpu.memory_space<vmem>>, %arg5: memref<1x32xf32, #tpu.memory_space<vmem>>, %arg6: memref<32x8xf32, #tpu.memory_space<vmem>>, %arg7: memref<1x8xf32, #tpu.memory_space<vmem>>, %arg8: memref<8x32xf32, #tpu.memory_space<vmem>>, %arg9: memref<1x32xf32, #tpu.memory_space<vmem>>, %arg10: memref<32x64xf32, #tpu.memory_space<vmem>>, %arg11: memref<1x64xf32, #tpu.memory_space<vmem>>, %arg12: memref<64x5xf32, #tpu.memory_space<vmem>>, %arg13: memref<1x5xf32, #tpu.memory_space<vmem>>, %arg14: memref<1x1x5xf32, #tpu.memory_space<vmem>>) attributes {dimension_semantics = [#tpu.dimension_semantics<parallel>], iteration_bounds = array<i64: 2>, scalar_prefetch = 0 : i64, scratch_operands = 0 : i64, tpu.core_type = #tpu.core_type<tc>, window_params = [{transform_indices = @transform_0, window_bounds = array<i64: 1, 160, 46>}, {pipeline_mode = #tpu.pipeline_mode<synchronous>, transform_indices = @transform_1, window_bounds = array<i64: 46, 32>}, {pipeline_mode = #tpu.pipeline_mode<synchronous>, transform_indices = @transform_2, window_bounds = array<i64: 9, 32>}, {pipeline_mode = #tpu.pipeline_mode<synchronous>, transform_indices = @transform_3, window_bounds = array<i64: 1, 32>}, {pipeline_mode = #tpu.pipeline_mode<synchronous>, transform_indices = @transform_4, window_bounds = array<i64: 1, 32>}, {pipeline_mode = #tpu.pipeline_mode<synchronous>, transform_indices = @transform_5, window_bounds = array<i64: 32, 8>}, {pipeline_mode = #tpu.pipeline_mode<synchronous>, transform_indices = @transform_6, window_bounds = array<i64: 1, 8>}, {pipeline_mode = #tpu.pipeline_mode<synchronous>, transform_indices = @transform_7, window_bounds = array<i64: 8, 32>}, {pipeline_mode = #tpu.pipeline_mode<synchronous>, transform_indices = @transform_8, window_bounds = array<i64: 1, 32>}, {pipeline_mode = #tpu.pipeline_mode<synchronous>, transform_indices = @transform_9, window_bounds = array<i64: 32, 64>}, {pipeline_mode = #tpu.pipeline_mode<synchronous>, transform_indices = @transform_10, window_bounds = array<i64: 1, 64>}, {pipeline_mode = #tpu.pipeline_mode<synchronous>, transform_indices = @transform_11, window_bounds = array<i64: 64, 5>}, {pipeline_mode = #tpu.pipeline_mode<synchronous>, transform_indices = @transform_12, window_bounds = array<i64: 1, 5>}, {transform_indices = @transform_13, window_bounds = array<i64: 1, 1, 5>}]} {
    %c0 = arith.constant 0 : index
    %c0_0 = arith.constant 0 : index
    %c0_1 = arith.constant 0 : index
    %0 = vector.load %arg1[%c0, %c0_0, %c0_1] : memref<1x160x46xf32, #tpu.memory_space<vmem>>, vector<1x160x46xf32>
    %1 = vector.shape_cast %0 : vector<1x160x46xf32> to vector<160x46xf32>
    %c0_2 = arith.constant 0 : index
    %c0_3 = arith.constant 0 : index
    %2 = vector.load %arg2[%c0_2, %c0_3] : memref<46x32xf32, #tpu.memory_space<vmem>>, vector<46x32xf32>
    %cst = arith.constant dense<0.000000e+00> : vector<160x32xf32>
    %3 = tpu.matmul %1, %2, %cst {dimension_numbers = #tpu.dot_dimension_numbers<[1], [0], [0], [1], [0, 0, 1, 1], [], []>} : vector<160x46xf32>, vector<46x32xf32>, vector<160x32xf32> -> vector<160x32xf32>
    %4 = arith.negf %3 : vector<160x32xf32>
    %5 = math.exp %4 : vector<160x32xf32>
    %cst_4 = arith.constant 1.000000e+00 : f32
    %6 = vector.broadcast %cst_4 : f32 to vector<160x32xf32>
    %7 = arith.addf %6, %5 : vector<160x32xf32>
    %8 = arith.divf %6, %7 : vector<160x32xf32>
    %9 = arith.mulf %3, %8 : vector<160x32xf32>
    %10 = vector.shape_cast %9 : vector<160x32xf32> to vector<10x16x32xf32>
    %c0_5 = arith.constant 0 : index
    %c0_6 = arith.constant 0 : index
    %11 = vector.load %arg3[%c0_5, %c0_6] : memref<9x32xf32, #tpu.memory_space<vmem>>, vector<9x32xf32>
    %12 = vector.extract_strided_slice %10 {offsets = [0, 0, 0], sizes = [8, 8, 32], strides = [1, 1, 1]} : vector<10x16x32xf32> to vector<8x8x32xf32>
    %13 = vector.extract_strided_slice %11 {offsets = [0, 0], sizes = [1, 32], strides = [1, 1]} : vector<9x32xf32> to vector<1x32xf32>
    %14 = vector.shape_cast %13 : vector<1x32xf32> to vector<1x1x32xf32>
    %15 = vector.broadcast %14 : vector<1x1x32xf32> to vector<8x8x32xf32>
    %16 = arith.mulf %12, %15 : vector<8x8x32xf32>
    %17 = vector.extract_strided_slice %10 {offsets = [0, 1, 0], sizes = [8, 8, 32], strides = [1, 1, 1]} : vector<10x16x32xf32> to vector<8x8x32xf32>
    %18 = vector.extract_strided_slice %11 {offsets = [1, 0], sizes = [1, 32], strides = [1, 1]} : vector<9x32xf32> to vector<1x32xf32>
    %19 = vector.shape_cast %18 : vector<1x32xf32> to vector<1x1x32xf32>
    %20 = vector.broadcast %19 : vector<1x1x32xf32> to vector<8x8x32xf32>
    %21 = arith.mulf %17, %20 : vector<8x8x32xf32>
    %22 = arith.addf %16, %21 : vector<8x8x32xf32>
    %23 = vector.extract_strided_slice %10 {offsets = [0, 2, 0], sizes = [8, 8, 32], strides = [1, 1, 1]} : vector<10x16x32xf32> to vector<8x8x32xf32>
    %24 = vector.extract_strided_slice %11 {offsets = [2, 0], sizes = [1, 32], strides = [1, 1]} : vector<9x32xf32> to vector<1x32xf32>
    %25 = vector.shape_cast %24 : vector<1x32xf32> to vector<1x1x32xf32>
    %26 = vector.broadcast %25 : vector<1x1x32xf32> to vector<8x8x32xf32>
    %27 = arith.mulf %23, %26 : vector<8x8x32xf32>
    %28 = arith.addf %22, %27 : vector<8x8x32xf32>
    %29 = vector.extract_strided_slice %10 {offsets = [1, 0, 0], sizes = [8, 8, 32], strides = [1, 1, 1]} : vector<10x16x32xf32> to vector<8x8x32xf32>
    %30 = vector.extract_strided_slice %11 {offsets = [3, 0], sizes = [1, 32], strides = [1, 1]} : vector<9x32xf32> to vector<1x32xf32>
    %31 = vector.shape_cast %30 : vector<1x32xf32> to vector<1x1x32xf32>
    %32 = vector.broadcast %31 : vector<1x1x32xf32> to vector<8x8x32xf32>
    %33 = arith.mulf %29, %32 : vector<8x8x32xf32>
    %34 = arith.addf %28, %33 : vector<8x8x32xf32>
    %35 = vector.extract_strided_slice %10 {offsets = [1, 1, 0], sizes = [8, 8, 32], strides = [1, 1, 1]} : vector<10x16x32xf32> to vector<8x8x32xf32>
    %36 = vector.extract_strided_slice %11 {offsets = [4, 0], sizes = [1, 32], strides = [1, 1]} : vector<9x32xf32> to vector<1x32xf32>
    %37 = vector.shape_cast %36 : vector<1x32xf32> to vector<1x1x32xf32>
    %38 = vector.broadcast %37 : vector<1x1x32xf32> to vector<8x8x32xf32>
    %39 = arith.mulf %35, %38 : vector<8x8x32xf32>
    %40 = arith.addf %34, %39 : vector<8x8x32xf32>
    %41 = vector.extract_strided_slice %10 {offsets = [1, 2, 0], sizes = [8, 8, 32], strides = [1, 1, 1]} : vector<10x16x32xf32> to vector<8x8x32xf32>
    %42 = vector.extract_strided_slice %11 {offsets = [5, 0], sizes = [1, 32], strides = [1, 1]} : vector<9x32xf32> to vector<1x32xf32>
    %43 = vector.shape_cast %42 : vector<1x32xf32> to vector<1x1x32xf32>
    %44 = vector.broadcast %43 : vector<1x1x32xf32> to vector<8x8x32xf32>
    %45 = arith.mulf %41, %44 : vector<8x8x32xf32>
    %46 = arith.addf %40, %45 : vector<8x8x32xf32>
    %47 = vector.extract_strided_slice %10 {offsets = [2, 0, 0], sizes = [8, 8, 32], strides = [1, 1, 1]} : vector<10x16x32xf32> to vector<8x8x32xf32>
    %48 = vector.extract_strided_slice %11 {offsets = [6, 0], sizes = [1, 32], strides = [1, 1]} : vector<9x32xf32> to vector<1x32xf32>
    %49 = vector.shape_cast %48 : vector<1x32xf32> to vector<1x1x32xf32>
    %50 = vector.broadcast %49 : vector<1x1x32xf32> to vector<8x8x32xf32>
    %51 = arith.mulf %47, %50 : vector<8x8x32xf32>
    %52 = arith.addf %46, %51 : vector<8x8x32xf32>
    %53 = vector.extract_strided_slice %10 {offsets = [2, 1, 0], sizes = [8, 8, 32], strides = [1, 1, 1]} : vector<10x16x32xf32> to vector<8x8x32xf32>
    %54 = vector.extract_strided_slice %11 {offsets = [7, 0], sizes = [1, 32], strides = [1, 1]} : vector<9x32xf32> to vector<1x32xf32>
    %55 = vector.shape_cast %54 : vector<1x32xf32> to vector<1x1x32xf32>
    %56 = vector.broadcast %55 : vector<1x1x32xf32> to vector<8x8x32xf32>
    %57 = arith.mulf %53, %56 : vector<8x8x32xf32>
    %58 = arith.addf %52, %57 : vector<8x8x32xf32>
    %59 = vector.extract_strided_slice %10 {offsets = [2, 2, 0], sizes = [8, 8, 32], strides = [1, 1, 1]} : vector<10x16x32xf32> to vector<8x8x32xf32>
    %60 = vector.extract_strided_slice %11 {offsets = [8, 0], sizes = [1, 32], strides = [1, 1]} : vector<9x32xf32> to vector<1x32xf32>
    %61 = vector.shape_cast %60 : vector<1x32xf32> to vector<1x1x32xf32>
    %62 = vector.broadcast %61 : vector<1x1x32xf32> to vector<8x8x32xf32>
    %63 = arith.mulf %59, %62 : vector<8x8x32xf32>
    %64 = arith.addf %58, %63 : vector<8x8x32xf32>
    %c0_7 = arith.constant 0 : index
    %c0_8 = arith.constant 0 : index
    %65 = vector.load %arg4[%c0_7, %c0_8] : memref<1x32xf32, #tpu.memory_space<vmem>>, vector<1x32xf32>
    %66 = vector.shape_cast %65 : vector<1x32xf32> to vector<1x1x32xf32>
    %67 = vector.broadcast %66 : vector<1x1x32xf32> to vector<8x8x32xf32>
    %68 = arith.mulf %64, %67 : vector<8x8x32xf32>
    %c0_9 = arith.constant 0 : index
    %c0_10 = arith.constant 0 : index
    %69 = vector.load %arg5[%c0_9, %c0_10] : memref<1x32xf32, #tpu.memory_space<vmem>>, vector<1x32xf32>
    %70 = vector.shape_cast %69 : vector<1x32xf32> to vector<1x1x32xf32>
    %71 = vector.broadcast %70 : vector<1x1x32xf32> to vector<8x8x32xf32>
    %72 = arith.addf %68, %71 : vector<8x8x32xf32>
    %73 = arith.negf %72 : vector<8x8x32xf32>
    %74 = math.exp %73 : vector<8x8x32xf32>
    %cst_11 = arith.constant 1.000000e+00 : f32
    %75 = vector.broadcast %cst_11 : f32 to vector<8x8x32xf32>
    %76 = arith.addf %75, %74 : vector<8x8x32xf32>
    %77 = arith.divf %75, %76 : vector<8x8x32xf32>
    %78 = arith.mulf %72, %77 : vector<8x8x32xf32>
    %79 = vector.shape_cast %78 : vector<8x8x32xf32> to vector<64x32xf32>
    %cst_12 = arith.constant dense<0.000000e+00> : vector<32xf32>
    %80 = vector.multi_reduction <add>, %79, %cst_12 [0] : vector<64x32xf32> to vector<32xf32>
    %81 = vector.shape_cast %80 : vector<32xf32> to vector<1x32xf32>
    %cst_13 = arith.constant 6.400000e+01 : f32
    %82 = vector.broadcast %cst_13 : f32 to vector<1x32xf32>
    %83 = arith.divf %81, %82 : vector<1x32xf32>
    %c0_14 = arith.constant 0 : index
    %c0_15 = arith.constant 0 : index
    %84 = vector.load %arg6[%c0_14, %c0_15] : memref<32x8xf32, #tpu.memory_space<vmem>>, vector<32x8xf32>
    %cst_16 = arith.constant dense<0.000000e+00> : vector<1x8xf32>
    %85 = tpu.matmul %83, %84, %cst_16 {dimension_numbers = #tpu.dot_dimension_numbers<[1], [0], [0], [1], [0, 0, 1, 1], [], []>} : vector<1x32xf32>, vector<32x8xf32>, vector<1x8xf32> -> vector<1x8xf32>
    %c0_17 = arith.constant 0 : index
    %c0_18 = arith.constant 0 : index
    %86 = vector.load %arg7[%c0_17, %c0_18] : memref<1x8xf32, #tpu.memory_space<vmem>>, vector<1x8xf32>
    %87 = arith.addf %85, %86 : vector<1x8xf32>
    %88 = arith.negf %87 : vector<1x8xf32>
    %89 = math.exp %88 : vector<1x8xf32>
    %cst_19 = arith.constant 1.000000e+00 : f32
    %90 = vector.broadcast %cst_19 : f32 to vector<1x8xf32>
    %91 = arith.addf %90, %89 : vector<1x8xf32>
    %92 = arith.divf %90, %91 : vector<1x8xf32>
    %93 = arith.mulf %87, %92 : vector<1x8xf32>
    %c0_20 = arith.constant 0 : index
    %c0_21 = arith.constant 0 : index
    %94 = vector.load %arg8[%c0_20, %c0_21] : memref<8x32xf32, #tpu.memory_space<vmem>>, vector<8x32xf32>
    %cst_22 = arith.constant dense<0.000000e+00> : vector<1x32xf32>
    %95 = tpu.matmul %93, %94, %cst_22 {dimension_numbers = #tpu.dot_dimension_numbers<[1], [0], [0], [1], [0, 0, 1, 1], [], []>} : vector<1x8xf32>, vector<8x32xf32>, vector<1x32xf32> -> vector<1x32xf32>
    %c0_23 = arith.constant 0 : index
    %c0_24 = arith.constant 0 : index
    %96 = vector.load %arg9[%c0_23, %c0_24] : memref<1x32xf32, #tpu.memory_space<vmem>>, vector<1x32xf32>
    %97 = arith.addf %95, %96 : vector<1x32xf32>
    %98 = arith.negf %97 : vector<1x32xf32>
    %99 = math.exp %98 : vector<1x32xf32>
    %cst_25 = arith.constant 1.000000e+00 : f32
    %100 = vector.broadcast %cst_25 : f32 to vector<1x32xf32>
    %101 = arith.addf %100, %99 : vector<1x32xf32>
    %102 = arith.divf %100, %101 : vector<1x32xf32>
    %103 = vector.broadcast %102 : vector<1x32xf32> to vector<64x32xf32>
    %104 = arith.mulf %79, %103 : vector<64x32xf32>
    %c0_26 = arith.constant 0 : index
    %c0_27 = arith.constant 0 : index
    %105 = vector.load %arg10[%c0_26, %c0_27] : memref<32x64xf32, #tpu.memory_space<vmem>>, vector<32x64xf32>
    %cst_28 = arith.constant dense<0.000000e+00> : vector<64x64xf32>
    %106 = tpu.matmul %104, %105, %cst_28 {dimension_numbers = #tpu.dot_dimension_numbers<[1], [0], [0], [1], [0, 0, 1, 1], [], []>} : vector<64x32xf32>, vector<32x64xf32>, vector<64x64xf32> -> vector<64x64xf32>
    %c0_29 = arith.constant 0 : index
    %c0_30 = arith.constant 0 : index
    %107 = vector.load %arg11[%c0_29, %c0_30] : memref<1x64xf32, #tpu.memory_space<vmem>>, vector<1x64xf32>
    %108 = vector.broadcast %107 : vector<1x64xf32> to vector<64x64xf32>
    %109 = arith.addf %106, %108 : vector<64x64xf32>
    %110 = arith.negf %109 : vector<64x64xf32>
    %111 = math.exp %110 : vector<64x64xf32>
    %cst_31 = arith.constant 1.000000e+00 : f32
    %112 = vector.broadcast %cst_31 : f32 to vector<64x64xf32>
    %113 = arith.addf %112, %111 : vector<64x64xf32>
    %114 = arith.divf %112, %113 : vector<64x64xf32>
    %115 = arith.mulf %109, %114 : vector<64x64xf32>
    %cst_32 = arith.constant dense<0.000000e+00> : vector<64xf32>
    %116 = vector.multi_reduction <add>, %115, %cst_32 [0] : vector<64x64xf32> to vector<64xf32>
    %117 = vector.shape_cast %116 : vector<64xf32> to vector<1x64xf32>
    %cst_33 = arith.constant 6.400000e+01 : f32
    %118 = vector.broadcast %cst_33 : f32 to vector<1x64xf32>
    %119 = arith.divf %117, %118 : vector<1x64xf32>
    %c0_34 = arith.constant 0 : index
    %c0_35 = arith.constant 0 : index
    %120 = vector.load %arg12[%c0_34, %c0_35] : memref<64x5xf32, #tpu.memory_space<vmem>>, vector<64x5xf32>
    %cst_36 = arith.constant dense<0.000000e+00> : vector<1x5xf32>
    %121 = tpu.matmul %119, %120, %cst_36 {dimension_numbers = #tpu.dot_dimension_numbers<[1], [0], [0], [1], [0, 0, 1, 1], [], []>} : vector<1x64xf32>, vector<64x5xf32>, vector<1x5xf32> -> vector<1x5xf32>
    %c0_37 = arith.constant 0 : index
    %c0_38 = arith.constant 0 : index
    %122 = vector.load %arg13[%c0_37, %c0_38] : memref<1x5xf32, #tpu.memory_space<vmem>>, vector<1x5xf32>
    %123 = arith.addf %121, %122 : vector<1x5xf32>
    %c0_39 = arith.constant 0 : index
    %c0_40 = arith.constant 0 : index
    %c0_41 = arith.constant 0 : index
    %124 = vector.load %arg14[%c0_39, %c0_40, %c0_41] : memref<1x1x5xf32, #tpu.memory_space<vmem>>, vector<1x1x5xf32>
    %125 = vector.shape_cast %124 : vector<1x1x5xf32> to vector<1x5xf32>
    %126 = vector.shape_cast %123 : vector<1x5xf32> to vector<1x1x5xf32>
    tpu.vector_store %arg14[%c0_39, %c0_40, %c0_41], %126 {strides = array<i32>} : memref<1x1x5xf32, #tpu.memory_space<vmem>>, vector<1x1x5xf32>,
    return
  }
  func.func @transform_0(%arg0: i32) -> (i32, i32, i32) {
    %c0_i32 = arith.constant 0 : i32
    %c0_i32_0 = arith.constant 0 : i32
    %c0_i32_1 = arith.constant 0 : i32
    return %arg0, %c0_i32, %c0_i32_0 : i32, i32, i32
  }
  func.func @transform_1(%arg0: i32) -> (i32, i32) {
    %c0_i32 = arith.constant 0 : i32
    %c0_i32_0 = arith.constant 0 : i32
    %c0_i32_1 = arith.constant 0 : i32
    return %c0_i32, %c0_i32_0 : i32, i32
  }
  func.func @transform_2(%arg0: i32) -> (i32, i32) {
    %c0_i32 = arith.constant 0 : i32
    %c0_i32_0 = arith.constant 0 : i32
    %c0_i32_1 = arith.constant 0 : i32
    return %c0_i32, %c0_i32_0 : i32, i32
  }
  func.func @transform_3(%arg0: i32) -> (i32, i32) {
    %c0_i32 = arith.constant 0 : i32
    %c0_i32_0 = arith.constant 0 : i32
    %c0_i32_1 = arith.constant 0 : i32
    return %c0_i32, %c0_i32_0 : i32, i32
  }
  func.func @transform_4(%arg0: i32) -> (i32, i32) {
    %c0_i32 = arith.constant 0 : i32
    %c0_i32_0 = arith.constant 0 : i32
    %c0_i32_1 = arith.constant 0 : i32
    return %c0_i32, %c0_i32_0 : i32, i32
  }
  func.func @transform_5(%arg0: i32) -> (i32, i32) {
    %c0_i32 = arith.constant 0 : i32
    %c0_i32_0 = arith.constant 0 : i32
    %c0_i32_1 = arith.constant 0 : i32
    return %c0_i32, %c0_i32_0 : i32, i32
  }
  func.func @transform_6(%arg0: i32) -> (i32, i32) {
    %c0_i32 = arith.constant 0 : i32
    %c0_i32_0 = arith.constant 0 : i32
    %c0_i32_1 = arith.constant 0 : i32
    return %c0_i32, %c0_i32_0 : i32, i32
  }
  func.func @transform_7(%arg0: i32) -> (i32, i32) {
    %c0_i32 = arith.constant 0 : i32
    %c0_i32_0 = arith.constant 0 : i32
    %c0_i32_1 = arith.constant 0 : i32
    return %c0_i32, %c0_i32_0 : i32, i32
  }
  func.func @transform_8(%arg0: i32) -> (i32, i32) {
    %c0_i32 = arith.constant 0 : i32
    %c0_i32_0 = arith.constant 0 : i32
    %c0_i32_1 = arith.constant 0 : i32
    return %c0_i32, %c0_i32_0 : i32, i32
  }
  func.func @transform_9(%arg0: i32) -> (i32, i32) {
    %c0_i32 = arith.constant 0 : i32
    %c0_i32_0 = arith.constant 0 : i32
    %c0_i32_1 = arith.constant 0 : i32
    return %c0_i32, %c0_i32_0 : i32, i32
  }
  func.func @transform_10(%arg0: i32) -> (i32, i32) {
    %c0_i32 = arith.constant 0 : i32
    %c0_i32_0 = arith.constant 0 : i32
    %c0_i32_1 = arith.constant 0 : i32
    return %c0_i32, %c0_i32_0 : i32, i32
  }
  func.func @transform_11(%arg0: i32) -> (i32, i32) {
    %c0_i32 = arith.constant 0 : i32
    %c0_i32_0 = arith.constant 0 : i32
    %c0_i32_1 = arith.constant 0 : i32
    return %c0_i32, %c0_i32_0 : i32, i32
  }
  func.func @transform_12(%arg0: i32) -> (i32, i32) {
    %c0_i32 = arith.constant 0 : i32
    %c0_i32_0 = arith.constant 0 : i32
    %c0_i32_1 = arith.constant 0 : i32
    return %c0_i32, %c0_i32_0 : i32, i32
  }
  func.func @transform_13(%arg0: i32) -> (i32, i32, i32) {
    %c0_i32 = arith.constant 0 : i32
    %c0_i32_0 = arith.constant 0 : i32
    %c0_i32_1 = arith.constant 0 : i32
    return %arg0, %c0_i32, %c0_i32_0 : i32, i32, i32
  }
}

</mosaic_0001>

<llo_original>
// kernel: custom_efficientnet_forward.1
$region0: #{custom_efficientnet_forward.1}
  #allocation0 [shape = 'u32[]', space=smem, size = 0x4, offset = 0x4, fixed_abs, tag = 'smem constant byte address 0x4 - core index']
  #allocation1 [shape = 'u32[144,128]{1,0:T(1,128)}', space=vmem, size = 0x12000, scoped, tag = 'internal scratch']
  %s0 = inlined_call_operand.vmem [shape: f32[2,160,46], index: 0, kind: input, shape index: {}]
  %s1 = inlined_call_operand.vmem [shape: f32[46,32], index: 1, kind: input, shape index: {}]
  %s2 = inlined_call_operand.vmem [shape: f32[9,32], index: 2, kind: input, shape index: {}]
  %s3 = inlined_call_operand.vmem [shape: f32[1,32], index: 3, kind: input, shape index: {}]
  %s4 = inlined_call_operand.vmem [shape: f32[1,32], index: 4, kind: input, shape index: {}]
  %s5 = inlined_call_operand.vmem [shape: f32[32,8], index: 5, kind: input, shape index: {}]
  %s6 = inlined_call_operand.vmem [shape: f32[1,8], index: 6, kind: input, shape index: {}]
  %s7 = inlined_call_operand.vmem [shape: f32[8,32], index: 7, kind: input, shape index: {}]
  %s8 = inlined_call_operand.vmem [shape: f32[1,32], index: 8, kind: input, shape index: {}]
  %s9 = inlined_call_operand.vmem [shape: f32[32,64], index: 9, kind: input, shape index: {}]
  %s10 = inlined_call_operand.vmem [shape: f32[1,64], index: 10, kind: input, shape index: {}]
  %s11 = inlined_call_operand.vmem [shape: f32[64,5], index: 11, kind: input, shape index: {}]
  %s12 = inlined_call_operand.vmem [shape: f32[1,5], index: 12, kind: input, shape index: {}]
  %s13 = inlined_call_operand.hbm [shape: f32[2,1,5], index: 13, kind: output, shape index: {}]
  %s14 = sld [smem:[#allocation0]]
  $region85: #{custom_efficientnet_forward.1} parent=0
    _
  %s16 = ssub.s32 1, %s14
  %s17 = scalar_select 0, %s16, %s14
  $region1: #{custom_efficientnet_forward.1} parent=0
    #allocation2 [shape = 'u8[1024]{0}', space=vmem, size = 0x400, scoped, tag = 'output window, operand 0']
    #allocation3 [shape = 's32[2]{0}', space=sflag, size = 0x8, scoped, tag = 'scoped memory for custom_efficientnet_forward.1']
    %18 = vsyncpa [#allocation3], 0
    %s19 = scalar_lea.sflag [#allocation3], 1
    %20 = vsyncpa %s19, 0
    loop: start=0, step=1, limit=4
    $region2: #{custom_efficientnet_forward.1} parent=1 // loop_pre_header
      _
    $region3: #{custom_efficientnet_forward.1} parent=1 // loop_header
      %s22 = sphi 0, %s26
      %p23 = scmp.ge.s32.totalorder %s22, 4
      %s32 = sphi 0, %s34
      %s35 = sphi 0, %s32
      %s36 = sphi 0, %s35
      %s52 = sphi 0, %s36
      %s56 = sphi 0, %s56
      %s58 = sphi 0, %s56
      %s59 = sphi 0, %s58
      %s73 = sphi 0, %s59
      %s77 = sphi 0, %s77
      %s79 = sphi 0, %s77
      %s80 = sphi 0, %s79
      %s94 = sphi 0, %s80
      %s98 = sphi 0, %s98
      %s100 = sphi 0, %s98
      %s101 = sphi 0, %s100
      %s115 = sphi 0, %s101
      %s119 = sphi 0, %s119
      %s121 = sphi 0, %s119
      %s122 = sphi 0, %s121
      %s136 = sphi 0, %s122
      %s140 = sphi 0, %s140
      %s142 = sphi 0, %s140
      %s143 = sphi 0, %s142
      %s157 = sphi 0, %s143
      %s161 = sphi 0, %s161
      %s163 = sphi 0, %s161
      %s164 = sphi 0, %s163
      %s178 = sphi 0, %s164
      %s182 = sphi 0, %s182
      %s184 = sphi 0, %s182
      %s185 = sphi 0, %s184
      %s199 = sphi 0, %s185
      %s203 = sphi 0, %s203
      %s205 = sphi 0, %s203
      %s206 = sphi 0, %s205
      %s220 = sphi 0, %s206
      %s224 = sphi 0, %s224
      %s226 = sphi 0, %s224
      %s227 = sphi 0, %s226
      %s241 = sphi 0, %s227
      %s245 = sphi 0, %s245
      %s247 = sphi 0, %s245
      %s248 = sphi 0, %s247
      %s262 = sphi 0, %s248
      %s266 = sphi 0, %s266
      %s268 = sphi 0, %s266
      %s269 = sphi 0, %s268
      %s283 = sphi 0, %s269
      %s287 = sphi 0, %s287
      %s289 = sphi 0, %s287
      %s290 = sphi 0, %s289
      %s304 = sphi 0, %s290
      %s310 = sphi 0, %s312
      %s313 = sphi 0, %s310
      %s314 = sphi 0, %s313
      %s330 = sphi 0, %s314
    $region4: #{custom_efficientnet_forward.1} parent=1 // loop_header_branch
      %25 = sbr.rel (%p23) target = $region8
    $region5: #{custom_efficientnet_forward.1} parent=1 // loop_body
      %s27 = ssub.s32 %s22, 1
      %s28 = ssub.s32 %s22, 2
      %s29 = sadd.s32 %s22, 1
      %s30 = ssub.s32 %s22, %s29
      %p31 = scmp.eq.s32.totalorder %s30, 0
      %s33 = sadd.s32 %s32, 1
      %s34 = scalar_select %p31, %s32, %s33
      %p37 = pneg %p31
      %p38 = scmp.eq.s32.totalorder %s22, 1
      %p39 = por %p37, %p38
      %p40 = scmp.ne.s32.totalorder %s32, %s35
      %p41 = scmp.eq.s32.totalorder %s22, 0
      %p42 = por %p40, %p41
      %p43 = scmp.ne.s32.totalorder %s32, %s35
      %p44 = scmp.eq.s32.totalorder %s27, 1
      %p45 = por %p43, %p44
      %p46 = scmp.ne.s32.totalorder %s35, %s36
      %p47 = scmp.eq.s32.totalorder %s27, 0
      %p48 = por %p46, %p47
      %p49 = scmp.ne.s32.totalorder %s35, %s36
      %p50 = scmp.eq.s32.totalorder %s28, 1
      %p51 = por %p49, %p50
      %p53 = scmp.ne.s32.totalorder %s36, %s52
      %p54 = scmp.eq.s32.totalorder %s28, 0
      %p55 = por %p53, %p54
      %s57 = sadd.s32 %s56, 1
      %p60 = scmp.eq.s32.totalorder %s22, 1
      %p61 = scmp.ne.s32.totalorder %s56, %s58
      %p62 = scmp.eq.s32.totalorder %s22, 0
      %p63 = por %p61, %p62
      %p64 = scmp.ne.s32.totalorder %s56, %s58
      %p65 = scmp.eq.s32.totalorder %s27, 1
      %p66 = por %p64, %p65
      %p67 = scmp.ne.s32.totalorder %s58, %s59
      %p68 = scmp.eq.s32.totalorder %s27, 0
      %p69 = por %p67, %p68
      %p70 = scmp.ne.s32.totalorder %s58, %s59
      %p71 = scmp.eq.s32.totalorder %s28, 1
      %p72 = por %p70, %p71
      %p74 = scmp.ne.s32.totalorder %s59, %s73
      %p75 = scmp.eq.s32.totalorder %s28, 0
      %p76 = por %p74, %p75
      %s78 = sadd.s32 %s77, 1
      %p81 = scmp.eq.s32.totalorder %s22, 1
      %p82 = scmp.ne.s32.totalorder %s77, %s79
      %p83 = scmp.eq.s32.totalorder %s22, 0
      %p84 = por %p82, %p83
      %p85 = scmp.ne.s32.totalorder %s77, %s79
      %p86 = scmp.eq.s32.totalorder %s27, 1
      %p87 = por %p85, %p86
      %p88 = scmp.ne.s32.totalorder %s79, %s80
      %p89 = scmp.eq.s32.totalorder %s27, 0
      %p90 = por %p88, %p89
      %p91 = scmp.ne.s32.totalorder %s79, %s80
      %p92 = scmp.eq.s32.totalorder %s28, 1
      %p93 = por %p91, %p92
      %p95 = scmp.ne.s32.totalorder %s80, %s94
      %p96 = scmp.eq.s32.totalorder %s28, 0
      %p97 = por %p95, %p96
      %s99 = sadd.s32 %s98, 1
      %p102 = scmp.eq.s32.totalorder %s22, 1
      %p103 = scmp.ne.s32.totalorder %s98, %s100
      %p104 = scmp.eq.s32.totalorder %s22, 0
      %p105 = por %p103, %p104
      %p106 = scmp.ne.s32.totalorder %s98, %s100
      %p107 = scmp.eq.s32.totalorder %s27, 1
      %p108 = por %p106, %p107
      %p109 = scmp.ne.s32.totalorder %s100, %s101
      %p110 = scmp.eq.s32.totalorder %s27, 0
      %p111 = por %p109, %p110
      %p112 = scmp.ne.s32.totalorder %s100, %s101
      %p113 = scmp.eq.s32.totalorder %s28, 1
      %p114 = por %p112, %p113
      %p116 = scmp.ne.s32.totalorder %s101, %s115
      %p117 = scmp.eq.s32.totalorder %s28, 0
      %p118 = por %p116, %p117
      %s120 = sadd.s32 %s119, 1
      %p123 = scmp.eq.s32.totalorder %s22, 1
      %p124 = scmp.ne.s32.totalorder %s119, %s121
      %p125 = scmp.eq.s32.totalorder %s22, 0
      %p126 = por %p124, %p125
      %p127 = scmp.ne.s32.totalorder %s119, %s121
      %p128 = scmp.eq.s32.totalorder %s27, 1
      %p129 = por %p127, %p128
      %p130 = scmp.ne.s32.totalorder %s121, %s122
      %p131 = scmp.eq.s32.totalorder %s27, 0
      %p132 = por %p130, %p131
      %p133 = scmp.ne.s32.totalorder %s121, %s122
      %p134 = scmp.eq.s32.totalorder %s28, 1
      %p135 = por %p133, %p134
      %p137 = scmp.ne.s32.totalorder %s122, %s136
      %p138 = scmp.eq.s32.totalorder %s28, 0
      %p139 = por %p137, %p138
      %s141 = sadd.s32 %s140, 1
      %p144 = scmp.eq.s32.totalorder %s22, 1
      %p145 = scmp.ne.s32.totalorder %s140, %s142
      %p146 = scmp.eq.s32.totalorder %s22, 0
      %p147 = por %p145, %p146
      %p148 = scmp.ne.s32.totalorder %s140, %s142
      %p149 = scmp.eq.s32.totalorder %s27, 1
      %p150 = por %p148, %p149
      %p151 = scmp.ne.s32.totalorder %s142, %s143
      %p152 = scmp.eq.s32.totalorder %s27, 0
      %p153 = por %p151, %p152
      %p154 = scmp.ne.s32.totalorder %s142, %s143
      %p155 = scmp.eq.s32.totalorder %s28, 1
      %p156 = por %p154, %p155
      %p158 = scmp.ne.s32.totalorder %s143, %s157
      %p159 = scmp.eq.s32.totalorder %s28, 0
      %p160 = por %p158, %p159
      %s162 = sadd.s32 %s161, 1
      %p165 = scmp.eq.s32.totalorder %s22, 1
      %p166 = scmp.ne.s32.totalorder %s161, %s163
      %p167 = scmp.eq.s32.totalorder %s22, 0
      %p168 = por %p166, %p167
      %p169 = scmp.ne.s32.totalorder %s161, %s163
      %p170 = scmp.eq.s32.totalorder %s27, 1
      %p171 = por %p169, %p170
      %p172 = scmp.ne.s32.totalorder %s163, %s164
      %p173 = scmp.eq.s32.totalorder %s27, 0
      %p174 = por %p172, %p173
      %p175 = scmp.ne.s32.totalorder %s163, %s164
      %p176 = scmp.eq.s32.totalorder %s28, 1
      %p177 = por %p175, %p176
      %p179 = scmp.ne.s32.totalorder %s164, %s178
      %p180 = scmp.eq.s32.totalorder %s28, 0
      %p181 = por %p179, %p180
      %s183 = sadd.s32 %s182, 1
      %p186 = scmp.eq.s32.totalorder %s22, 1
      %p187 = scmp.ne.s32.totalorder %s182, %s184
      %p188 = scmp.eq.s32.totalorder %s22, 0
      %p189 = por %p187, %p188
      %p190 = scmp.ne.s32.totalorder %s182, %s184
      %p191 = scmp.eq.s32.totalorder %s27, 1
      %p192 = por %p190, %p191
      %p193 = scmp.ne.s32.totalorder %s184, %s185
      %p194 = scmp.eq.s32.totalorder %s27, 0
      %p195 = por %p193, %p194
      %p196 = scmp.ne.s32.totalorder %s184, %s185
      %p197 = scmp.eq.s32.totalorder %s28, 1
      %p198 = por %p196, %p197
      %p200 = scmp.ne.s32.totalorder %s185, %s199
      %p201 = scmp.eq.s32.totalorder %s28, 0
      %p202 = por %p200, %p201
      %s204 = sadd.s32 %s203, 1
      %p207 = scmp.eq.s32.totalorder %s22, 1
      %p208 = scmp.ne.s32.totalorder %s203, %s205
      %p209 = scmp.eq.s32.totalorder %s22, 0
      %p210 = por %p208, %p209
      %p211 = scmp.ne.s32.totalorder %s203, %s205
      %p212 = scmp.eq.s32.totalorder %s27, 1
      %p213 = por %p211, %p212
      %p214 = scmp.ne.s32.totalorder %s205, %s206
      %p215 = scmp.eq.s32.totalorder %s27, 0
      %p216 = por %p214, %p215
      %p217 = scmp.ne.s32.totalorder %s205, %s206
      %p218 = scmp.eq.s32.totalorder %s28, 1
      %p219 = por %p217, %p218
      %p221 = scmp.ne.s32.totalorder %s206, %s220
      %p222 = scmp.eq.s32.totalorder %s28, 0
      %p223 = por %p221, %p222
      %s225 = sadd.s32 %s224, 1
      %p228 = scmp.eq.s32.totalorder %s22, 1
      %p229 = scmp.ne.s32.totalorder %s224, %s226
      %p230 = scmp.eq.s32.totalorder %s22, 0
      %p231 = por %p229, %p230
      %p232 = scmp.ne.s32.totalorder %s224, %s226
      %p233 = scmp.eq.s32.totalorder %s27, 1
      %p234 = por %p232, %p233
      %p235 = scmp.ne.s32.totalorder %s226, %s227
      %p236 = scmp.eq.s32.totalorder %s27, 0
      %p237 = por %p235, %p236
      %p238 = scmp.ne.s32.totalorder %s226, %s227
      %p239 = scmp.eq.s32.totalorder %s28, 1
      %p240 = por %p238, %p239
      %p242 = scmp.ne.s32.totalorder %s227, %s241
      %p243 = scmp.eq.s32.totalorder %s28, 0
      %p244 = por %p242, %p243
      %s246 = sadd.s32 %s245, 1
      %p249 = scmp.eq.s32.totalorder %s22, 1
      %p250 = scmp.ne.s32.totalorder %s245, %s247
      %p251 = scmp.eq.s32.totalorder %s22, 0
      %p252 = por %p250, %p251
      %p253 = scmp.ne.s32.totalorder %s245, %s247
      %p254 = scmp.eq.s32.totalorder %s27, 1
      %p255 = por %p253, %p254
      %p256 = scmp.ne.s32.totalorder %s247, %s248
      %p257 = scmp.eq.s32.totalorder %s27, 0
      %p258 = por %p256, %p257
      %p259 = scmp.ne.s32.totalorder %s247, %s248
      %p260 = scmp.eq.s32.totalorder %s28, 1
      %p261 = por %p259, %p260
      %p263 = scmp.ne.s32.totalorder %s248, %s262
      %p264 = scmp.eq.s32.totalorder %s28, 0
      %p265 = por %p263, %p264
      %s267 = sadd.s32 %s266, 1
      %p270 = scmp.eq.s32.totalorder %s22, 1
      %p271 = scmp.ne.s32.totalorder %s266, %s268
      %p272 = scmp.eq.s32.totalorder %s22, 0
      %p273 = por %p271, %p272
      %p274 = scmp.ne.s32.totalorder %s266, %s268
      %p275 = scmp.eq.s32.totalorder %s27, 1
      %p276 = por %p274, %p275
      %p277 = scmp.ne.s32.totalorder %s268, %s269
      %p278 = scmp.eq.s32.totalorder %s27, 0
      %p279 = por %p277, %p278
      %p280 = scmp.ne.s32.totalorder %s268, %s269
      %p281 = scmp.eq.s32.totalorder %s28, 1
      %p282 = por %p280, %p281
      %p284 = scmp.ne.s32.totalorder %s269, %s283
      %p285 = scmp.eq.s32.totalorder %s28, 0
      %p286 = por %p284, %p285
      %s288 = sadd.s32 %s287, 1
      %p291 = scmp.eq.s32.totalorder %s22, 1
      %p292 = scmp.ne.s32.totalorder %s287, %s289
      %p293 = scmp.eq.s32.totalorder %s22, 0
      %p294 = por %p292, %p293
      %p295 = scmp.ne.s32.totalorder %s287, %s289
      %p296 = scmp.eq.s32.totalorder %s27, 1
      %p297 = por %p295, %p296
      %p298 = scmp.ne.s32.totalorder %s289, %s290
      %p299 = scmp.eq.s32.totalorder %s27, 0
      %p300 = por %p298, %p299
      %p301 = scmp.ne.s32.totalorder %s289, %s290
      %p302 = scmp.eq.s32.totalorder %s28, 1
      %p303 = por %p301, %p302
      %p305 = scmp.ne.s32.totalorder %s290, %s304
      %p306 = scmp.eq.s32.totalorder %s28, 0
      %p307 = por %p305, %p306
      %s308 = ssub.s32 %s22, %s29
      %p309 = scmp.eq.s32.totalorder %s308, 0
      %s311 = sadd.s32 %s310, 1
      %s312 = scalar_select %p309, %s310, %s311
      %p315 = pneg %p309
      %p316 = scmp.eq.s32.totalorder %s22, 1
      %p317 = por %p315, %p316
      %p318 = scmp.ne.s32.totalorder %s310, %s313
      %p319 = scmp.eq.s32.totalorder %s22, 0
      %p320 = por %p318, %p319
      %p321 = scmp.ne.s32.totalorder %s310, %s313
      %p322 = scmp.eq.s32.totalorder %s27, 1
      %p323 = por %p321, %p322
      %p324 = scmp.ne.s32.totalorder %s313, %s314
      %p325 = scmp.eq.s32.totalorder %s27, 0
      %p326 = por %p324, %p325
      %p327 = scmp.ne.s32.totalorder %s313, %s314
      %p328 = scmp.eq.s32.totalorder %s28, 1
      %p329 = por %p327, %p328
      %p331 = scmp.ne.s32.totalorder %s314, %s330
      %p332 = scmp.eq.s32.totalorder %s28, 0
      %p333 = por %p331, %p332
      %p334 = scmp.le.s32.totalorder 1, %s22
      %p335 = scmp.lt.s32.totalorder %s22, 3
      %p336 = pnand %p334, %p335
      %p337 = pneg %p336
      // Predicated region
      $region9: #{custom_efficientnet_forward.1} parent=5 // pred_check
        _
      $region10: #{custom_efficientnet_forward.1} parent=5 // pred_check_branch
        %339 = sbr.rel (%p336) target = $region12
      $region11: #{custom_efficientnet_forward.1} parent=5 // pred_region
        %s340 = ssub.s32 %s22, 1
        // Predicated region
        $region13: #{custom_efficientnet_forward.1} parent=11 // pred_check
          %p341 = pneg %p69
        $region14: #{custom_efficientnet_forward.1} parent=11 // pred_check_branch
          %343 = sbr.rel (%p341) target = $region16
        $region15: #{custom_efficientnet_forward.1} parent=11 // pred_region
          _
        $region16: #{custom_efficientnet_forward.1} parent=11 // pred_fallthru
          _
        // Predicated region
        $region17: #{custom_efficientnet_forward.1} parent=11 // pred_check
          %p344 = pneg %p90
        $region18: #{custom_efficientnet_forward.1} parent=11 // pred_check_branch
          %346 = sbr.rel (%p344) target = $region20
        $region19: #{custom_efficientnet_forward.1} parent=11 // pred_region
          _
        $region20: #{custom_efficientnet_forward.1} parent=11 // pred_fallthru
          _
        // Predicated region
        $region21: #{custom_efficientnet_forward.1} parent=11 // pred_check
          %p347 = pneg %p111
        $region22: #{custom_efficientnet_forward.1} parent=11 // pred_check_branch
          %349 = sbr.rel (%p347) target = $region24
        $region23: #{custom_efficientnet_forward.1} parent=11 // pred_region
          _
        $region24: #{custom_efficientnet_forward.1} parent=11 // pred_fallthru
          _
        // Predicated region
        $region25: #{custom_efficientnet_forward.1} parent=11 // pred_check
          %p350 = pneg %p132
        $region26: #{custom_efficientnet_forward.1} parent=11 // pred_check_branch
          %352 = sbr.rel (%p350) target = $region28
        $region27: #{custom_efficientnet_forward.1} parent=11 // pred_region
          _
        $region28: #{custom_efficientnet_forward.1} parent=11 // pred_fallthru
          _
        // Predicated region
        $region29: #{custom_efficientnet_forward.1} parent=11 // pred_check
          %p353 = pneg %p153
        $region30: #{custom_efficientnet_forward.1} parent=11 // pred_check_branch
          %355 = sbr.rel (%p353) target = $region32
        $region31: #{custom_efficientnet_forward.1} parent=11 // pred_region
          _
        $region32: #{custom_efficientnet_forward.1} parent=11 // pred_fallthru
          _
        // Predicated region
        $region33: #{custom_efficientnet_forward.1} parent=11 // pred_check
          %p356 = pneg %p174
        $region34: #{custom_efficientnet_forward.1} parent=11 // pred_check_branch
          %358 = sbr.rel (%p356) target = $region36
        $region35: #{custom_efficientnet_forward.1} parent=11 // pred_region
          _
        $region36: #{custom_efficientnet_forward.1} parent=11 // pred_fallthru
          _
        // Predicated region
        $region37: #{custom_efficientnet_forward.1} parent=11 // pred_check
          %p359 = pneg %p195
        $region38: #{custom_efficientnet_forward.1} parent=11 // pred_check_branch
          %361 = sbr.rel (%p359) target = $region40
        $region39: #{custom_efficientnet_forward.1} parent=11 // pred_region
          _
        $region40: #{custom_efficientnet_forward.1} parent=11 // pred_fallthru
          _
        // Predicated region
        $region41: #{custom_efficientnet_forward.1} parent=11 // pred_check
          %p362 = pneg %p216
        $region42: #{custom_efficientnet_forward.1} parent=11 // pred_check_branch
          %364 = sbr.rel (%p362) target = $region44
        $region43: #{custom_efficientnet_forward.1} parent=11 // pred_region
          _
        $region44: #{custom_efficientnet_forward.1} parent=11 // pred_fallthru
          _
        // Predicated region
        $region45: #{custom_efficientnet_forward.1} parent=11 // pred_check
          %p365 = pneg %p237
        $region46: #{custom_efficientnet_forward.1} parent=11 // pred_check_branch
          %367 = sbr.rel (%p365) target = $region48
        $region47: #{custom_efficientnet_forward.1} parent=11 // pred_region
          _
        $region48: #{custom_efficientnet_forward.1} parent=11 // pred_fallthru
          _
        // Predicated region
        $region49: #{custom_efficientnet_forward.1} parent=11 // pred_check
          %p368 = pneg %p258
        $region50: #{custom_efficientnet_forward.1} parent=11 // pred_check_branch
          %370 = sbr.rel (%p368) target = $region52
        $region51: #{custom_efficientnet_forward.1} parent=11 // pred_region
          _
        $region52: #{custom_efficientnet_forward.1} parent=11 // pred_fallthru
          _
        // Predicated region
        $region53: #{custom_efficientnet_forward.1} parent=11 // pred_check
          %p371 = pneg %p279
        $region54: #{custom_efficientnet_forward.1} parent=11 // pred_check_branch
          %373 = sbr.rel (%p371) target = $region56
        $region55: #{custom_efficientnet_forward.1} parent=11 // pred_region
          _
        $region56: #{custom_efficientnet_forward.1} parent=11 // pred_fallthru
          _
        // Predicated region
        $region57: #{custom_efficientnet_forward.1} parent=11 // pred_check
          %p374 = pneg %p300
        $region58: #{custom_efficientnet_forward.1} parent=11 // pred_check_branch
          %376 = sbr.rel (%p374) target = $region60
        $region59: #{custom_efficientnet_forward.1} parent=11 // pred_region
          _
        $region60: #{custom_efficientnet_forward.1} parent=11 // pred_fallthru
          _
      $region12: #{custom_efficientnet_forward.1} parent=5 // pred_fallthru
        _
      %p377 = scmp.lt.s32.totalorder %s22, 2
      // Predicated region
      $region61: #{custom_efficientnet_forward.1} parent=5 // pred_check
        %p378 = pneg %p377
      $region62: #{custom_efficientnet_forward.1} parent=5 // pred_check_branch
        %380 = sbr.rel (%p378) target = $region64
      $region63: #{custom_efficientnet_forward.1} parent=5 // pred_region
        // Predicated region
        $region65: #{custom_efficientnet_forward.1} parent=63 // pred_check
          %p381 = pneg %p42
        $region66: #{custom_efficientnet_forward.1} parent=63 // pred_check_branch
          %383 = sbr.rel (%p381) target = $region68
        $region67: #{custom_efficientnet_forward.1} parent=63 // pred_region
          %p384 = scmp.lt.s32.totalorder %s22, 1
          %s385 = scalar_select %p384, %s22, 1
          %s386 = smul.addr %s385, 20
          %s387 = smul.addr %s386, 8
          %s388 = scalar_lea.vmem %s0, %s387
        $region68: #{custom_efficientnet_forward.1} parent=63 // pred_fallthru
          _
      $region64: #{custom_efficientnet_forward.1} parent=5 // pred_fallthru
        _
      %p389 = scmp.le.s32.totalorder 1, %s22
      %p390 = scmp.lt.s32.totalorder %s22, 3
      %p391 = pnand %p389, %p390
      %p392 = pneg %p391
      // Predicated region
      $region69: #{custom_efficientnet_forward.1} parent=5 // pred_check
        _
      $region70: #{custom_efficientnet_forward.1} parent=5 // pred_check_branch
        %394 = sbr.rel (%p391) target = $region72
      $region71: #{custom_efficientnet_forward.1} parent=5 // pred_region
        %s395 = ssub.s32 %s22, 1
        %p396 = scmp.lt.s32.totalorder %s27, 1
        %s397 = scalar_select %p396, %s27, 1
        %s398 = smul.addr %s397, 20
        %s399 = smul.addr %s398, 8
        %s400 = scalar_lea.vmem %s0, %s399
        %p401 = pneg %p48
        %p402 = pneg %p45
        %p403 = pneg %p69
        %p404 = pneg %p66
        %p405 = pneg %p90
        %p406 = pneg %p87
        %p407 = pneg %p111
        %p408 = pneg %p108
        %p409 = pneg %p132
        %p410 = pneg %p129
        %p411 = pneg %p153
        %p412 = pneg %p150
        %p413 = pneg %p174
        %p414 = pneg %p171
        %p415 = pneg %p195
        %p416 = pneg %p192
        %p417 = pneg %p216
        %p418 = pneg %p213
        %p419 = pneg %p237
        %p420 = pneg %p234
        %p421 = pneg %p258
        %p422 = pneg %p255
        %p423 = pneg %p279
        %p424 = pneg %p276
        %p425 = pneg %p300
        %p426 = pneg %p297
        %p427 = pneg %p326
        %p428 = pneg %p323
        %s429 = sand.u32 %s313, 1
        %s430 = scalar_lea.sflag [#allocation3], %s429
        %s431 = sand.u32 %s313, 1
        %s432 = scalar_lea.vmem [#allocation2], %s431
        %p433 = scmp.lt.s32.totalorder %s27, 1
        %s434 = scalar_select %p433, %s27, 1
        %s435 = smul.addr %s434, 20
        %s436 = smul.addr %s435, 8
        %s437 = scalar_lea.vmem %s0, %s436
        %v438 = vld [vmem:[%s437] sm:$0xff]
        %v439 = vld [vmem:[%s437 + $0x8] sm:$0xff]
        %v440 = vld [vmem:[%s437 + $0x10] sm:$0xff]
        %v441 = vld [vmem:[%s437 + $0x18] sm:$0xff]
        %v442 = vld [vmem:[%s437 + $0x20] sm:$0xff]
        %v443 = vld [vmem:[%s437 + $0x28] sm:$0xff]
        %v444 = vld [vmem:[%s437 + $0x30] sm:$0xff]
        %v445 = vld [vmem:[%s437 + $0x38] sm:$0xff]
        %v446 = vld [vmem:[%s437 + $0x40] sm:$0xff]
        %v447 = vld [vmem:[%s437 + $0x48] sm:$0xff]
        %v448 = vld [vmem:[%s437 + $0x50] sm:$0xff]
        %v449 = vld [vmem:[%s437 + $0x58] sm:$0xff]
        %v450 = vld [vmem:[%s437 + $0x60] sm:$0xff]
        %v451 = vld [vmem:[%s437 + $0x68] sm:$0xff]
        %v452 = vld [vmem:[%s437 + $0x70] sm:$0xff]
        %v453 = vld [vmem:[%s437 + $0x78] sm:$0xff]
        %v454 = vld [vmem:[%s437 + $0x80] sm:$0xff]
        %v455 = vld [vmem:[%s437 + $0x88] sm:$0xff]
        %v456 = vld [vmem:[%s437 + $0x90] sm:$0xff]
        %v457 = vld [vmem:[%s437 + $0x98] sm:$0xff]
        %v458 = vld [vmem:[%s1] sm:$0xff]
        %v459 = vld [vmem:[%s1 + $0x8] sm:$0xff]
        %v460 = vld [vmem:[%s1 + $0x10] sm:$0xff]
        %v461 = vld [vmem:[%s1 + $0x18] sm:$0xff]
        %v462 = vld [vmem:[%s1 + $0x20] sm:$0xff]
        %v463 = vld [vmem:[%s1 + $0x28] sm:$0x3f]
        %vm464 = vcmask 375808
        %v466 = vsel %vm464, %v438, 0
        %v469 = vsel %vm464, %v439, 0
        %v472 = vsel %vm464, %v440, 0
        %v475 = vsel %vm464, %v441, 0
        %v478 = vsel %vm464, %v442, 0
        %v481 = vsel %vm464, %v443, 0
        %v484 = vsel %vm464, %v444, 0
        %v487 = vsel %vm464, %v445, 0
        %v490 = vsel %vm464, %v446, 0
        %v493 = vsel %vm464, %v447, 0
        %v496 = vsel %vm464, %v448, 0
        %v499 = vsel %vm464, %v449, 0
        %v502 = vsel %vm464, %v450, 0
        %v505 = vsel %vm464, %v451, 0
        %v508 = vsel %vm464, %v452, 0
        %v511 = vsel %vm464, %v453, 0
        %v514 = vsel %vm464, %v454, 0
        %v517 = vsel %vm464, %v455, 0
        %v520 = vsel %vm464, %v456, 0
        %v523 = vsel %vm464, %v457, 0
        %vm525 = vcmask 1045504
        %v527 = vsel %vm525, %v463, 0
        %529 = vmatprep.subr.mxu0 0.0
        %530 = vmatpush1.msra.mxu0 %v458
        %531 = vmatprep.subr.mxu0 0.0
        %532 = vmatpush1.msra.mxu0 %v459
        %533 = vmatprep.subr.mxu0 0.0
        %534 = vmatpush1.msra.mxu0 %v460
        %535 = vmatprep.subr.mxu0 0.0
        %536 = vmatpush1.msra.mxu0 %v461
        %537 = vmatprep.subr.mxu0 0.0
        %538 = vmatpush1.msra.mxu0 %v462
        %539 = vmatprep.subr.mxu0 0.0
        %540 = vmatpush1.msra.mxu0 %v527
        %541 = vmatprep.subr.mxu0 0.0
        %542 = vmatpush1.msra.mxu0 0.0
        %543 = vmatprep.subr.mxu0 0.0
        %544 = vmatpush1.msra.mxu0 0.0
        %545 = vmatprep.subr.mxu0 0.0
        %546 = vmatpush1.msra.mxu0 0.0
        %547 = vmatprep.subr.mxu0 0.0
        %548 = vmatpush1.msra.mxu0 0.0
        %549 = vmatprep.subr.mxu0 0.0
        %550 = vmatpush1.msra.mxu0 0.0
        %551 = vmatprep.subr.mxu0 0.0
        %552 = vmatpush1.msra.mxu0 0.0
        %553 = vmatprep.subr.mxu0 0.0
        %554 = vmatpush1.msra.mxu0 0.0
        %555 = vmatprep.subr.mxu0 0.0
        %556 = vmatpush1.msra.mxu0 0.0
        %557 = vmatprep.subr.mxu0 0.0
        %558 = vmatpush1.msra.mxu0 0.0
        %559 = vmatprep.subr.mxu0 0.0
        %560 = vmatpush1.msra.mxu0 0.0
        %561 = vmatprep.subr.mxu0 0.0
        %562 = vmatpush1.msra.mxu0 0.0
        %563 = vmatprep.subr.mxu0 0.0
        %564 = vmatpush1.msra.mxu0 0.0
        %565 = vmatprep.subr.mxu0 0.0
        %566 = vmatpush1.msra.mxu0 0.0
        %567 = vmatprep.subr.mxu0 0.0
        %568 = vmatpush1.msra.mxu0 0.0
        %569 = vmatprep.subr.mxu0 0.0
        %570 = vmatpush1.msra.mxu0 0.0
        %571 = vmatprep.subr.mxu0 0.0
        %572 = vmatpush1.msra.mxu0 0.0
        %573 = vmatprep.subr.mxu0 0.0
        %574 = vmatpush1.msra.mxu0 0.0
        %575 = vmatprep.subr.mxu0 0.0
        %576 = vmatpush1.msra.mxu0 0.0
        %577 = vmatprep.subr.mxu0 0.0
        %578 = vmatpush1.msra.mxu0 0.0
        %579 = vmatprep.subr.mxu0 0.0
        %580 = vmatpush1.msra.mxu0 0.0
        %581 = vmatprep.subr.mxu0 0.0
        %582 = vmatpush1.msra.mxu0 0.0
        %583 = vmatprep.subr.mxu0 0.0
        %584 = vmatpush1.msra.mxu0 0.0
        %585 = vmatprep.subr.mxu0 0.0
        %586 = vmatpush1.msra.mxu0 0.0
        %587 = vmatprep.subr.mxu0 0.0
        %588 = vmatpush1.msra.mxu0 0.0
        %589 = vmatprep.subr.mxu0 0.0
        %590 = vmatpush1.msra.mxu0 0.0
        %591 = vmatprep.subr.mxu0 0.0
        %592 = vmatpush1.msra.mxu0 0.0
        %593 = vmatprep.mubr.f32.mxu0 0.0
        %594 = vmatmul.mubr.f32.gmra.mrb[0].mxu0 %v466
        %v595 = vpop.f32.mrb[0].mxu0
        %v596 = vadd.f32 0.0, %v595
        %v597 = vpop.f32.mrb[0].mxu0
        %598 = vmatprep.mubr.f32.mxu0 0.0
        %599 = vmatmul.mubr.f32.gmra.mrb[0].mxu0 %v469
        %v600 = vpop.f32.mrb[0].mxu0
        %v601 = vadd.f32 0.0, %v600
        %v602 = vpop.f32.mrb[0].mxu0
        %603 = vmatprep.mubr.f32.mxu0 0.0
        %604 = vmatmul.mubr.f32.gmra.mrb[0].mxu0 %v472
        %v605 = vpop.f32.mrb[0].mxu0
        %v606 = vadd.f32 0.0, %v605
        %v607 = vpop.f32.mrb[0].mxu0
        %608 = vmatprep.mubr.f32.mxu0 0.0
        %609 = vmatmul.mubr.f32.gmra.mrb[0].mxu0 %v475
        %v610 = vpop.f32.mrb[0].mxu0
        %v611 = vadd.f32 0.0, %v610
        %v612 = vpop.f32.mrb[0].mxu0
        %613 = vmatprep.mubr.f32.mxu0 0.0
        %614 = vmatmul.mubr.f32.gmra.mrb[0].mxu0 %v478
        %v615 = vpop.f32.mrb[0].mxu0
        %v616 = vadd.f32 0.0, %v615
        %v617 = vpop.f32.mrb[0].mxu0
        %618 = vmatprep.mubr.f32.mxu0 0.0
        %619 = vmatmul.mubr.f32.gmra.mrb[0].mxu0 %v481
        %v620 = vpop.f32.mrb[0].mxu0
        %v621 = vadd.f32 0.0, %v620
        %v622 = vpop.f32.mrb[0].mxu0
        %623 = vmatprep.mubr.f32.mxu0 0.0
        %624 = vmatmul.mubr.f32.gmra.mrb[0].mxu0 %v484
        %v625 = vpop.f32.mrb[0].mxu0
        %v626 = vadd.f32 0.0, %v625
        %v627 = vpop.f32.mrb[0].mxu0
        %628 = vmatprep.mubr.f32.mxu0 0.0
        %629 = vmatmul.mubr.f32.gmra.mrb[0].mxu0 %v487
        %v630 = vpop.f32.mrb[0].mxu0
        %v631 = vadd.f32 0.0, %v630
        %v632 = vpop.f32.mrb[0].mxu0
        %633 = vmatprep.mubr.f32.mxu0 0.0
        %634 = vmatmul.mubr.f32.gmra.mrb[0].mxu0 %v490
        %v635 = vpop.f32.mrb[0].mxu0
        %v636 = vadd.f32 0.0, %v635
        %v637 = vpop.f32.mrb[0].mxu0
        %638 = vmatprep.mubr.f32.mxu0 0.0
        %639 = vmatmul.mubr.f32.gmra.mrb[0].mxu0 %v493
        %v640 = vpop.f32.mrb[0].mxu0
        %v641 = vadd.f32 0.0, %v640
        %v642 = vpop.f32.mrb[0].mxu0
        %643 = vmatprep.mubr.f32.mxu0 0.0
        %644 = vmatmul.mubr.f32.gmra.mrb[0].mxu0 %v496
        %v645 = vpop.f32.mrb[0].mxu0
        %v646 = vadd.f32 0.0, %v645
        %v647 = vpop.f32.mrb[0].mxu0
        %648 = vmatprep.mubr.f32.mxu0 0.0
        %649 = vmatmul.mubr.f32.gmra.mrb[0].mxu0 %v499
        %v650 = vpop.f32.mrb[0].mxu0
        %v651 = vadd.f32 0.0, %v650
        %v652 = vpop.f32.mrb[0].mxu0
        %653 = vmatprep.mubr.f32.mxu0 0.0
        %654 = vmatmul.mubr.f32.gmra.mrb[0].mxu0 %v502
        %v655 = vpop.f32.mrb[0].mxu0
        %v656 = vadd.f32 0.0, %v655
        %v657 = vpop.f32.mrb[0].mxu0
        %658 = vmatprep.mubr.f32.mxu0 0.0
        %659 = vmatmul.mubr.f32.gmra.mrb[0].mxu0 %v505
        %v660 = vpop.f32.mrb[0].mxu0
        %v661 = vadd.f32 0.0, %v660
        %v662 = vpop.f32.mrb[0].mxu0
        %663 = vmatprep.mubr.f32.mxu0 0.0
        %664 = vmatmul.mubr.f32.gmra.mrb[0].mxu0 %v508
        %v665 = vpop.f32.mrb[0].mxu0
        %v666 = vadd.f32 0.0, %v665
        %v667 = vpop.f32.mrb[0].mxu0
        %668 = vmatprep.mubr.f32.mxu0 0.0
        %669 = vmatmul.mubr.f32.gmra.mrb[0].mxu0 %v511
        %v670 = vpop.f32.mrb[0].mxu0
        %v671 = vadd.f32 0.0, %v670
        %v672 = vpop.f32.mrb[0].mxu0
        %673 = vmatprep.mubr.f32.mxu0 0.0
        %674 = vmatmul.mubr.f32.gmra.mrb[0].mxu0 %v514
        %v675 = vpop.f32.mrb[0].mxu0
        %v676 = vadd.f32 0.0, %v675
        %v677 = vpop.f32.mrb[0].mxu0
        %678 = vmatprep.mubr.f32.mxu0 0.0
        %679 = vmatmul.mubr.f32.gmra.mrb[0].mxu0 %v517
        %v680 = vpop.f32.mrb[0].mxu0
        %v681 = vadd.f32 0.0, %v680
        %v682 = vpop.f32.mrb[0].mxu0
        %683 = vmatprep.mubr.f32.mxu0 0.0
        %684 = vmatmul.mubr.f32.gmra.mrb[0].mxu0 %v520
        %v685 = vpop.f32.mrb[0].mxu0
        %v686 = vadd.f32 0.0, %v685
        %v687 = vpop.f32.mrb[0].mxu0
        %688 = vmatprep.mubr.f32.mxu0 0.0
        %689 = vmatmul.mubr.f32.gmra.mrb[0].mxu0 %v523
        %v690 = vpop.f32.mrb[0].mxu0
        %v691 = vadd.f32 0.0, %v690
        %v692 = vpop.f32.mrb[0].mxu0
        %693 = vdwg.mxu0
        %v694 = vxor.u32 %v596, 2147483648
        %v695 = vxor.u32 %v601, 2147483648
        %v696 = vxor.u32 %v606, 2147483648
        %v697 = vxor.u32 %v611, 2147483648
        %v698 = vxor.u32 %v616, 2147483648
        %v699 = vxor.u32 %v621, 2147483648
        %v700 = vxor.u32 %v626, 2147483648
        %v701 = vxor.u32 %v631, 2147483648
        %v702 = vxor.u32 %v636, 2147483648
        %v703 = vxor.u32 %v641, 2147483648
        %v704 = vxor.u32 %v646, 2147483648
        %v705 = vxor.u32 %v651, 2147483648
        %v706 = vxor.u32 %v656, 2147483648
        %v707 = vxor.u32 %v661, 2147483648
        %v708 = vxor.u32 %v666, 2147483648
        %v709 = vxor.u32 %v671, 2147483648
        %v710 = vxor.u32 %v676, 2147483648
        %v711 = vxor.u32 %v681, 2147483648
        %v712 = vxor.u32 %v686, 2147483648
        %v713 = vxor.u32 %v691, 2147483648
        %v714 = vmul.f32 %v694, 1.442695
        %v715 = vpow.pop %v714
        %v716 = vmul.f32 %v695, 1.442695
        %v717 = vpow.pop %v716
        %v718 = vmul.f32 %v696, 1.442695
        %v719 = vpow.pop %v718
        %v720 = vmul.f32 %v697, 1.442695
        %v721 = vpow.pop %v720
        %v722 = vmul.f32 %v698, 1.442695
        %v723 = vpow.pop %v722
        %v724 = vmul.f32 %v699, 1.442695
        %v725 = vpow.pop %v724
        %v726 = vmul.f32 %v700, 1.442695
        %v727 = vpow.pop %v726
        %v728 = vmul.f32 %v701, 1.442695
        %v729 = vpow.pop %v728
        %v730 = vmul.f32 %v702, 1.442695
        %v731 = vpow.pop %v730
        %v732 = vmul.f32 %v703, 1.442695
        %v733 = vpow.pop %v732
        %v734 = vmul.f32 %v704, 1.442695
        %v735 = vpow.pop %v734
        %v736 = vmul.f32 %v705, 1.442695
        %v737 = vpow.pop %v736
        %v738 = vmul.f32 %v706, 1.442695
        %v739 = vpow.pop %v738
        %v740 = vmul.f32 %v707, 1.442695
        %v741 = vpow.pop %v740
        %v742 = vmul.f32 %v708, 1.442695
        %v743 = vpow.pop %v742
        %v744 = vmul.f32 %v709, 1.442695
        %v745 = vpow.pop %v744
        %v746 = vmul.f32 %v710, 1.442695
        %v747 = vpow.pop %v746
        %v748 = vmul.f32 %v711, 1.442695
        %v749 = vpow.pop %v748
        %v750 = vmul.f32 %v712, 1.442695
        %v751 = vpow.pop %v750
        %v752 = vmul.f32 %v713, 1.442695
        %v753 = vpow.pop %v752
        %v754 = vadd.f32 %v715, 1.0
        %v755 = vadd.f32 %v717, 1.0
        %v756 = vadd.f32 %v719, 1.0
        %v757 = vadd.f32 %v721, 1.0
        %v758 = vadd.f32 %v723, 1.0
        %v759 = vadd.f32 %v725, 1.0
        %v760 = vadd.f32 %v727, 1.0
        %v761 = vadd.f32 %v729, 1.0
        %v762 = vadd.f32 %v731, 1.0
        %v763 = vadd.f32 %v733, 1.0
        %v764 = vadd.f32 %v735, 1.0
        %v765 = vadd.f32 %v737, 1.0
        %v766 = vadd.f32 %v739, 1.0
        %v767 = vadd.f32 %v741, 1.0
        %v768 = vadd.f32 %v743, 1.0
        %v769 = vadd.f32 %v745, 1.0
        %v770 = vadd.f32 %v747, 1.0
        %v771 = vadd.f32 %v749, 1.0
        %v772 = vadd.f32 %v751, 1.0
        %v773 = vadd.f32 %v753, 1.0
        %v774 = vrcp.pop %v754
        %v775 = vmul.f32 1.0, %v774
        %v776 = vrcp.pop %v755
        %v777 = vmul.f32 1.0, %v776
        %v778 = vrcp.pop %v756
        %v779 = vmul.f32 1.0, %v778
        %v780 = vrcp.pop %v757
        %v781 = vmul.f32 1.0, %v780
        %v782 = vrcp.pop %v758
        %v783 = vmul.f32 1.0, %v782
        %v784 = vrcp.pop %v759
        %v785 = vmul.f32 1.0, %v784
        %v786 = vrcp.pop %v760
        %v787 = vmul.f32 1.0, %v786
        %v788 = vrcp.pop %v761
        %v789 = vmul.f32 1.0, %v788
        %v790 = vrcp.pop %v762
        %v791 = vmul.f32 1.0, %v790
        %v792 = vrcp.pop %v763
        %v793 = vmul.f32 1.0, %v792
        %v794 = vrcp.pop %v764
        %v795 = vmul.f32 1.0, %v794
        %v796 = vrcp.pop %v765
        %v797 = vmul.f32 1.0, %v796
        %v798 = vrcp.pop %v766
        %v799 = vmul.f32 1.0, %v798
        %v800 = vrcp.pop %v767
        %v801 = vmul.f32 1.0, %v800
        %v802 = vrcp.pop %v768
        %v803 = vmul.f32 1.0, %v802
        %v804 = vrcp.pop %v769
        %v805 = vmul.f32 1.0, %v804
        %v806 = vrcp.pop %v770
        %v807 = vmul.f32 1.0, %v806
        %v808 = vrcp.pop %v771
        %v809 = vmul.f32 1.0, %v808
        %v810 = vrcp.pop %v772
        %v811 = vmul.f32 1.0, %v810
        %v812 = vrcp.pop %v773
        %v813 = vmul.f32 1.0, %v812
        %v814 = vmul.f32 %v596, %v775
        %v815 = vmul.f32 %v601, %v777
        %v816 = vmul.f32 %v606, %v779
        %v817 = vmul.f32 %v611, %v781
        %v818 = vmul.f32 %v616, %v783
        %v819 = vmul.f32 %v621, %v785
        %v820 = vmul.f32 %v626, %v787
        %v821 = vmul.f32 %v631, %v789
        %v822 = vmul.f32 %v636, %v791
        %v823 = vmul.f32 %v641, %v793
        %v824 = vmul.f32 %v646, %v795
        %v825 = vmul.f32 %v651, %v797
        %v826 = vmul.f32 %v656, %v799
        %v827 = vmul.f32 %v661, %v801
        %v828 = vmul.f32 %v666, %v803
        %v829 = vmul.f32 %v671, %v805
        %v830 = vmul.f32 %v676, %v807
        %v831 = vmul.f32 %v681, %v809
        %v832 = vmul.f32 %v686, %v811
        %v833 = vmul.f32 %v691, %v813
        %v834 = vld [vmem:[%s2] sm:$0xff]
        %v835 = vld [vmem:[%s2 + $0x8] sm:$0x1]
        %v836 = vlaneseq
        %v837 = vshrl.u32 %v836, 7
        %v838 = vsub.s32 0, %v837
        %v839 = vrot.slane %v834, %v838
        %v840 = vmul.f32 %v814, %v839
        %v841 = vmul.f32 %v816, %v839
        %v842 = vmul.f32 %v818, %v839
        %v843 = vmul.f32 %v820, %v839
        %v844 = vmul.f32 %v822, %v839
        %v845 = vmul.f32 %v824, %v839
        %v846 = vmul.f32 %v826, %v839
        %v847 = vmul.f32 %v828, %v839
        %v848 = vlaneseq
        %v849 = vshrl.u32 %v848, 7
        %v850 = vsub.s32 1, %v849
        %v851 = vrot.slane %v834, %v850
        %v852 = vmul.f32 %v814, %v851
        %v853 = vmul.f32 %v815, %v851
        %v854 = vmul.f32 %v816, %v851
        %v855 = vmul.f32 %v817, %v851
        %v856 = vmul.f32 %v818, %v851
        %v857 = vmul.f32 %v819, %v851
        %v858 = vmul.f32 %v820, %v851
        %v859 = vmul.f32 %v821, %v851
        %v860 = vmul.f32 %v822, %v851
        %v861 = vmul.f32 %v823, %v851
        %v862 = vmul.f32 %v824, %v851
        %v863 = vmul.f32 %v825, %v851
        %v864 = vmul.f32 %v826, %v851
        %v865 = vmul.f32 %v827, %v851
        %v866 = vmul.f32 %v828, %v851
        %v867 = vmul.f32 %v829, %v851
        %vm884 = vcmask 1046528
        %v885 = vrot.slane %v852, 1
        %v886 = vrot.slane %v853, 1
        %v887 = vsel %vm884, %v885, %v886
        %v888 = vrot.slane %v854, 1
        %v889 = vrot.slane %v855, 1
        %v890 = vsel %vm884, %v888, %v889
        %v891 = vrot.slane %v856, 1
        %v892 = vrot.slane %v857, 1
        %v893 = vsel %vm884, %v891, %v892
        %v894 = vrot.slane %v858, 1
        %v895 = vrot.slane %v859, 1
        %v896 = vsel %vm884, %v894, %v895
        %v897 = vrot.slane %v860, 1
        %v898 = vrot.slane %v861, 1
        %v899 = vsel %vm884, %v897, %v898
        %v900 = vrot.slane %v862, 1
        %v901 = vrot.slane %v863, 1
        %v902 = vsel %vm884, %v900, %v901
        %v903 = vrot.slane %v864, 1
        %v904 = vrot.slane %v865, 1
        %v905 = vsel %vm884, %v903, %v904
        %v906 = vrot.slane %v866, 1
        %v907 = vrot.slane %v867, 1
        %v908 = vsel %vm884, %v906, %v907
        %v917 = vadd.f32 %v840, %v887
        %v918 = vadd.f32 %v841, %v890
        %v919 = vadd.f32 %v842, %v893
        %v920 = vadd.f32 %v843, %v896
        %v921 = vadd.f32 %v844, %v899
        %v922 = vadd.f32 %v845, %v902
        %v923 = vadd.f32 %v846, %v905
        %v924 = vadd.f32 %v847, %v908
        %v925 = vlaneseq
        %v926 = vshrl.u32 %v925, 7
        %v927 = vsub.s32 2, %v926
        %v928 = vrot.slane %v834, %v927
        %v929 = vmul.f32 %v814, %v928
        %v930 = vmul.f32 %v815, %v928
        %v931 = vmul.f32 %v816, %v928
        %v932 = vmul.f32 %v817, %v928
        %v933 = vmul.f32 %v818, %v928
        %v934 = vmul.f32 %v819, %v928
        %v935 = vmul.f32 %v820, %v928
        %v936 = vmul.f32 %v821, %v928
        %v937 = vmul.f32 %v822, %v928
        %v938 = vmul.f32 %v823, %v928
        %v939 = vmul.f32 %v824, %v928
        %v940 = vmul.f32 %v825, %v928
        %v941 = vmul.f32 %v826, %v928
        %v942 = vmul.f32 %v827, %v928
        %v943 = vmul.f32 %v828, %v928
        %v944 = vmul.f32 %v829, %v928
        %v961 = vrot.slane %v929, 2
        %v962 = vrot.slane %v930, 2
        %v963 = vsel %vm525, %v961, %v962
        %v964 = vrot.slane %v931, 2
        %v965 = vrot.slane %v932, 2
        %v966 = vsel %vm525, %v964, %v965
        %v967 = vrot.slane %v933, 2
        %v968 = vrot.slane %v934, 2
        %v969 = vsel %vm525, %v967, %v968
        %v970 = vrot.slane %v935, 2
        %v971 = vrot.slane %v936, 2
        %v972 = vsel %vm525, %v970, %v971
        %v973 = vrot.slane %v937, 2
        %v974 = vrot.slane %v938, 2
        %v975 = vsel %vm525, %v973, %v974
        %v976 = vrot.slane %v939, 2
        %v977 = vrot.slane %v940, 2
        %v978 = vsel %vm525, %v976, %v977
        %v979 = vrot.slane %v941, 2
        %v980 = vrot.slane %v942, 2
        %v981 = vsel %vm525, %v979, %v980
        %v982 = vrot.slane %v943, 2
        %v983 = vrot.slane %v944, 2
        %v984 = vsel %vm525, %v982, %v983
        %v993 = vadd.f32 %v917, %v963
        %v994 = vadd.f32 %v918, %v966
        %v995 = vadd.f32 %v919, %v969
        %v996 = vadd.f32 %v920, %v972
        %v997 = vadd.f32 %v921, %v975
        %v998 = vadd.f32 %v922, %v978
        %v999 = vadd.f32 %v923, %v981
        %v1000 = vadd.f32 %v924, %v984
        %v1001 = vlaneseq
        %v1002 = vshrl.u32 %v1001, 7
        %v1003 = vsub.s32 3, %v1002
        %v1004 = vrot.slane %v834, %v1003
        %v1005 = vmul.f32 %v816, %v1004
        %v1006 = vmul.f32 %v818, %v1004
        %v1007 = vmul.f32 %v820, %v1004
        %v1008 = vmul.f32 %v822, %v1004
        %v1009 = vmul.f32 %v824, %v1004
        %v1010 = vmul.f32 %v826, %v1004
        %v1011 = vmul.f32 %v828, %v1004
        %v1012 = vmul.f32 %v830, %v1004
        %v1013 = vadd.f32 %v993, %v1005
        %v1014 = vadd.f32 %v994, %v1006
        %v1015 = vadd.f32 %v995, %v1007
        %v1016 = vadd.f32 %v996, %v1008
        %v1017 = vadd.f32 %v997, %v1009
        %v1018 = vadd.f32 %v998, %v1010
        %v1019 = vadd.f32 %v999, %v1011
        %v1020 = vadd.f32 %v1000, %v1012
        %v1021 = vlaneseq
        %v1022 = vshrl.u32 %v1021, 7
        %v1023 = vsub.s32 4, %v1022
        %v1024 = vrot.slane %v834, %v1023
        %v1025 = vmul.f32 %v816, %v1024
        %v1026 = vmul.f32 %v817, %v1024
        %v1027 = vmul.f32 %v818, %v1024
        %v1028 = vmul.f32 %v819, %v1024
        %v1029 = vmul.f32 %v820, %v1024
        %v1030 = vmul.f32 %v821, %v1024
        %v1031 = vmul.f32 %v822, %v1024
        %v1032 = vmul.f32 %v823, %v1024
        %v1033 = vmul.f32 %v824, %v1024
        %v1034 = vmul.f32 %v825, %v1024
        %v1035 = vmul.f32 %v826, %v1024
        %v1036 = vmul.f32 %v827, %v1024
        %v1037 = vmul.f32 %v828, %v1024
        %v1038 = vmul.f32 %v829, %v1024
        %v1039 = vmul.f32 %v830, %v1024
        %v1040 = vmul.f32 %v831, %v1024
        %v1057 = vrot.slane %v1025, 1
        %v1058 = vrot.slane %v1026, 1
        %v1059 = vsel %vm884, %v1057, %v1058
        %v1060 = vrot.slane %v1027, 1
        %v1061 = vrot.slane %v1028, 1
        %v1062 = vsel %vm884, %v1060, %v1061
        %v1063 = vrot.slane %v1029, 1
        %v1064 = vrot.slane %v1030, 1
        %v1065 = vsel %vm884, %v1063, %v1064
        %v1066 = vrot.slane %v1031, 1
        %v1067 = vrot.slane %v1032, 1
        %v1068 = vsel %vm884, %v1066, %v1067
        %v1069 = vrot.slane %v1033, 1
        %v1070 = vrot.slane %v1034, 1
        %v1071 = vsel %vm884, %v1069, %v1070
        %v1072 = vrot.slane %v1035, 1
        %v1073 = vrot.slane %v1036, 1
        %v1074 = vsel %vm884, %v1072, %v1073
        %v1075 = vrot.slane %v1037, 1
        %v1076 = vrot.slane %v1038, 1
        %v1077 = vsel %vm884, %v1075, %v1076
        %v1078 = vrot.slane %v1039, 1
        %v1079 = vrot.slane %v1040, 1
        %v1080 = vsel %vm884, %v1078, %v1079
        %v1089 = vadd.f32 %v1013, %v1059
        %v1090 = vadd.f32 %v1014, %v1062
        %v1091 = vadd.f32 %v1015, %v1065
        %v1092 = vadd.f32 %v1016, %v1068
        %v1093 = vadd.f32 %v1017, %v1071
        %v1094 = vadd.f32 %v1018, %v1074
        %v1095 = vadd.f32 %v1019, %v1077
        %v1096 = vadd.f32 %v1020, %v1080
        %v1097 = vlaneseq
        %v1098 = vshrl.u32 %v1097, 7
        %v1099 = vsub.s32 5, %v1098
        %v1100 = vrot.slane %v834, %v1099
        %v1101 = vmul.f32 %v816, %v1100
        %v1102 = vmul.f32 %v817, %v1100
        %v1103 = vmul.f32 %v818, %v1100
        %v1104 = vmul.f32 %v819, %v1100
        %v1105 = vmul.f32 %v820, %v1100
        %v1106 = vmul.f32 %v821, %v1100
        %v1107 = vmul.f32 %v822, %v1100
        %v1108 = vmul.f32 %v823, %v1100
        %v1109 = vmul.f32 %v824, %v1100
        %v1110 = vmul.f32 %v825, %v1100
        %v1111 = vmul.f32 %v826, %v1100
        %v1112 = vmul.f32 %v827, %v1100
        %v1113 = vmul.f32 %v828, %v1100
        %v1114 = vmul.f32 %v829, %v1100
        %v1115 = vmul.f32 %v830, %v1100
        %v1116 = vmul.f32 %v831, %v1100
        %v1133 = vrot.slane %v1101, 2
        %v1134 = vrot.slane %v1102, 2
        %v1135 = vsel %vm525, %v1133, %v1134
        %v1136 = vrot.slane %v1103, 2
        %v1137 = vrot.slane %v1104, 2
        %v1138 = vsel %vm525, %v1136, %v1137
        %v1139 = vrot.slane %v1105, 2
        %v1140 = vrot.slane %v1106, 2
        %v1141 = vsel %vm525, %v1139, %v1140
        %v1142 = vrot.slane %v1107, 2
        %v1143 = vrot.slane %v1108, 2
        %v1144 = vsel %vm525, %v1142, %v1143
        %v1145 = vrot.slane %v1109, 2
        %v1146 = vrot.slane %v1110, 2
        %v1147 = vsel %vm525, %v1145, %v1146
        %v1148 = vrot.slane %v1111, 2
        %v1149 = vrot.slane %v1112, 2
        %v1150 = vsel %vm525, %v1148, %v1149
        %v1151 = vrot.slane %v1113, 2
        %v1152 = vrot.slane %v1114, 2
        %v1153 = vsel %vm525, %v1151, %v1152
        %v1154 = vrot.slane %v1115, 2
        %v1155 = vrot.slane %v1116, 2
        %v1156 = vsel %vm525, %v1154, %v1155
        %v1165 = vadd.f32 %v1089, %v1135
        %v1166 = vadd.f32 %v1090, %v1138
        %v1167 = vadd.f32 %v1091, %v1141
        %v1168 = vadd.f32 %v1092, %v1144
        %v1169 = vadd.f32 %v1093, %v1147
        %v1170 = vadd.f32 %v1094, %v1150
        %v1171 = vadd.f32 %v1095, %v1153
        %v1172 = vadd.f32 %v1096, %v1156
        %v1173 = vlaneseq
        %v1174 = vshrl.u32 %v1173, 7
        %v1175 = vsub.s32 6, %v1174
        %v1176 = vrot.slane %v834, %v1175
        %v1177 = vmul.f32 %v818, %v1176
        %v1178 = vmul.f32 %v820, %v1176
        %v1179 = vmul.f32 %v822, %v1176
        %v1180 = vmul.f32 %v824, %v1176
        %v1181 = vmul.f32 %v826, %v1176
        %v1182 = vmul.f32 %v828, %v1176
        %v1183 = vmul.f32 %v830, %v1176
        %v1184 = vmul.f32 %v832, %v1176
        %v1185 = vadd.f32 %v1165, %v1177
        %v1186 = vadd.f32 %v1166, %v1178
        %v1187 = vadd.f32 %v1167, %v1179
        %v1188 = vadd.f32 %v1168, %v1180
        %v1189 = vadd.f32 %v1169, %v1181
        %v1190 = vadd.f32 %v1170, %v1182
        %v1191 = vadd.f32 %v1171, %v1183
        %v1192 = vadd.f32 %v1172, %v1184
        %v1193 = vlaneseq
        %v1194 = vshrl.u32 %v1193, 7
        %v1195 = vsub.s32 7, %v1194
        %v1196 = vrot.slane %v834, %v1195
        %v1197 = vmul.f32 %v818, %v1196
        %v1198 = vmul.f32 %v819, %v1196
        %v1199 = vmul.f32 %v820, %v1196
        %v1200 = vmul.f32 %v821, %v1196
        %v1201 = vmul.f32 %v822, %v1196
        %v1202 = vmul.f32 %v823, %v1196
        %v1203 = vmul.f32 %v824, %v1196
        %v1204 = vmul.f32 %v825, %v1196
        %v1205 = vmul.f32 %v826, %v1196
        %v1206 = vmul.f32 %v827, %v1196
        %v1207 = vmul.f32 %v828, %v1196
        %v1208 = vmul.f32 %v829, %v1196
        %v1209 = vmul.f32 %v830, %v1196
        %v1210 = vmul.f32 %v831, %v1196
        %v1211 = vmul.f32 %v832, %v1196
        %v1212 = vmul.f32 %v833, %v1196
        %v1229 = vrot.slane %v1197, 1
        %v1230 = vrot.slane %v1198, 1
        %v1231 = vsel %vm884, %v1229, %v1230
        %v1232 = vrot.slane %v1199, 1
        %v1233 = vrot.slane %v1200, 1
        %v1234 = vsel %vm884, %v1232, %v1233
        %v1235 = vrot.slane %v1201, 1
        %v1236 = vrot.slane %v1202, 1
        %v1237 = vsel %vm884, %v1235, %v1236
        %v1238 = vrot.slane %v1203, 1
        %v1239 = vrot.slane %v1204, 1
        %v1240 = vsel %vm884, %v1238, %v1239
        %v1241 = vrot.slane %v1205, 1
        %v1242 = vrot.slane %v1206, 1
        %v1243 = vsel %vm884, %v1241, %v1242
        %v1244 = vrot.slane %v1207, 1
        %v1245 = vrot.slane %v1208, 1
        %v1246 = vsel %vm884, %v1244, %v1245
        %v1247 = vrot.slane %v1209, 1
        %v1248 = vrot.slane %v1210, 1
        %v1249 = vsel %vm884, %v1247, %v1248
        %v1250 = vrot.slane %v1211, 1
        %v1251 = vrot.slane %v1212, 1
        %v1252 = vsel %vm884, %v1250, %v1251
        %v1261 = vadd.f32 %v1185, %v1231
        %v1262 = vadd.f32 %v1186, %v1234
        %v1263 = vadd.f32 %v1187, %v1237
        %v1264 = vadd.f32 %v1188, %v1240
        %v1265 = vadd.f32 %v1189, %v1243
        %v1266 = vadd.f32 %v1190, %v1246
        %v1267 = vadd.f32 %v1191, %v1249
        %v1268 = vadd.f32 %v1192, %v1252
        %v1269 = vlaneseq
        %v1270 = vshrl.u32 %v1269, 7
        %v1271 = vsub.s32 0, %v1270
        %v1272 = vrot.slane %v835, %v1271
        %v1273 = vmul.f32 %v818, %v1272
        %v1274 = vmul.f32 %v819, %v1272
        %v1275 = vmul.f32 %v820, %v1272
        %v1276 = vmul.f32 %v821, %v1272
        %v1277 = vmul.f32 %v822, %v1272
        %v1278 = vmul.f32 %v823, %v1272
        %v1279 = vmul.f32 %v824, %v1272
        %v1280 = vmul.f32 %v825, %v1272
        %v1281 = vmul.f32 %v826, %v1272
        %v1282 = vmul.f32 %v827, %v1272
        %v1283 = vmul.f32 %v828, %v1272
        %v1284 = vmul.f32 %v829, %v1272
        %v1285 = vmul.f32 %v830, %v1272
        %v1286 = vmul.f32 %v831, %v1272
        %v1287 = vmul.f32 %v832, %v1272
        %v1288 = vmul.f32 %v833, %v1272
        %v1305 = vrot.slane %v1273, 2
        %v1306 = vrot.slane %v1274, 2
        %v1307 = vsel %vm525, %v1305, %v1306
        %v1308 = vrot.slane %v1275, 2
        %v1309 = vrot.slane %v1276, 2
        %v1310 = vsel %vm525, %v1308, %v1309
        %v1311 = vrot.slane %v1277, 2
        %v1312 = vrot.slane %v1278, 2
        %v1313 = vsel %vm525, %v1311, %v1312
        %v1314 = vrot.slane %v1279, 2
        %v1315 = vrot.slane %v1280, 2
        %v1316 = vsel %vm525, %v1314, %v1315
        %v1317 = vrot.slane %v1281, 2
        %v1318 = vrot.slane %v1282, 2
        %v1319 = vsel %vm525, %v1317, %v1318
        %v1320 = vrot.slane %v1283, 2
        %v1321 = vrot.slane %v1284, 2
        %v1322 = vsel %vm525, %v1320, %v1321
        %v1323 = vrot.slane %v1285, 2
        %v1324 = vrot.slane %v1286, 2
        %v1325 = vsel %vm525, %v1323, %v1324
        %v1326 = vrot.slane %v1287, 2
        %v1327 = vrot.slane %v1288, 2
        %v1328 = vsel %vm525, %v1326, %v1327
        %v1337 = vadd.f32 %v1261, %v1307
        %v1338 = vadd.f32 %v1262, %v1310
        %v1339 = vadd.f32 %v1263, %v1313
        %v1340 = vadd.f32 %v1264, %v1316
        %v1341 = vadd.f32 %v1265, %v1319
        %v1342 = vadd.f32 %v1266, %v1322
        %v1343 = vadd.f32 %v1267, %v1325
        %v1344 = vadd.f32 %v1268, %v1328
        %v1345 = vld [vmem:[%s3] sm:$0x1]
        %v1347 = vlaneseq
        %v1348 = vshrl.u32 %v1347, 7
        %v1349 = vsub.s32 0, %v1348
        %v1350 = vrot.slane %v1345, %v1349
        %v1352 = vmul.f32 %v1337, %v1350
        %v1353 = vmul.f32 %v1338, %v1350
        %v1354 = vmul.f32 %v1339, %v1350
        %v1355 = vmul.f32 %v1340, %v1350
        %v1356 = vmul.f32 %v1341, %v1350
        %v1357 = vmul.f32 %v1342, %v1350
        %v1358 = vmul.f32 %v1343, %v1350
        %v1359 = vmul.f32 %v1344, %v1350
        %v1360 = vld [vmem:[%s4] sm:$0x1]
        %v1362 = vlaneseq
        %v1363 = vshrl.u32 %v1362, 7
        %v1364 = vsub.s32 0, %v1363
        %v1365 = vrot.slane %v1360, %v1364
        %v1367 = vadd.f32 %v1352, %v1365
        %v1368 = vadd.f32 %v1353, %v1365
        %v1369 = vadd.f32 %v1354, %v1365
        %v1370 = vadd.f32 %v1355, %v1365
        %v1371 = vadd.f32 %v1356, %v1365
        %v1372 = vadd.f32 %v1357, %v1365
        %v1373 = vadd.f32 %v1358, %v1365
        %v1374 = vadd.f32 %v1359, %v1365
        %v1375 = vxor.u32 %v1367, 2147483648
        %v1376 = vxor.u32 %v1368, 2147483648
        %v1377 = vxor.u32 %v1369, 2147483648
        %v1378 = vxor.u32 %v1370, 2147483648
        %v1379 = vxor.u32 %v1371, 2147483648
        %v1380 = vxor.u32 %v1372, 2147483648
        %v1381 = vxor.u32 %v1373, 2147483648
        %v1382 = vxor.u32 %v1374, 2147483648
        %v1383 = vmul.f32 %v1375, 1.442695
        %v1384 = vpow.pop %v1383
        %v1385 = vmul.f32 %v1376, 1.442695
        %v1386 = vpow.pop %v1385
        %v1387 = vmul.f32 %v1377, 1.442695
        %v1388 = vpow.pop %v1387
        %v1389 = vmul.f32 %v1378, 1.442695
        %v1390 = vpow.pop %v1389
        %v1391 = vmul.f32 %v1379, 1.442695
        %v1392 = vpow.pop %v1391
        %v1393 = vmul.f32 %v1380, 1.442695
        %v1394 = vpow.pop %v1393
        %v1395 = vmul.f32 %v1381, 1.442695
        %v1396 = vpow.pop %v1395
        %v1397 = vmul.f32 %v1382, 1.442695
        %v1398 = vpow.pop %v1397
        %v1399 = vadd.f32 %v1384, 1.0
        %v1400 = vadd.f32 %v1386, 1.0
        %v1401 = vadd.f32 %v1388, 1.0
        %v1402 = vadd.f32 %v1390, 1.0
        %v1403 = vadd.f32 %v1392, 1.0
        %v1404 = vadd.f32 %v1394, 1.0
        %v1405 = vadd.f32 %v1396, 1.0
        %v1406 = vadd.f32 %v1398, 1.0
        %v1407 = vrcp.pop %v1399
        %v1408 = vmul.f32 1.0, %v1407
        %v1409 = vrcp.pop %v1400
        %v1410 = vmul.f32 1.0, %v1409
        %v1411 = vrcp.pop %v1401
        %v1412 = vmul.f32 1.0, %v1411
        %v1413 = vrcp.pop %v1402
        %v1414 = vmul.f32 1.0, %v1413
        %v1415 = vrcp.pop %v1403
        %v1416 = vmul.f32 1.0, %v1415
        %v1417 = vrcp.pop %v1404
        %v1418 = vmul.f32 1.0, %v1417
        %v1419 = vrcp.pop %v1405
        %v1420 = vmul.f32 1.0, %v1419
        %v1421 = vrcp.pop %v1406
        %v1422 = vmul.f32 1.0, %v1421
        %v1423 = vmul.f32 %v1367, %v1408
        %v1424 = vmul.f32 %v1368, %v1410
        %v1425 = vmul.f32 %v1369, %v1412
        %v1426 = vmul.f32 %v1370, %v1414
        %v1427 = vmul.f32 %v1371, %v1416
        %v1428 = vmul.f32 %v1372, %v1418
        %v1429 = vmul.f32 %v1373, %v1420
        %v1430 = vmul.f32 %v1374, %v1422
        %vm1431 = vcmask 261120
        %v1432 = vsel %vm1431, %v1423, 0.0
        %v1433 = vsel %vm1431, %v1424, 0.0
        %v1434 = vadd.f32 %v1432, %v1433
        %v1435 = vsel %vm1431, %v1425, 0.0
        %v1436 = vadd.f32 %v1434, %v1435
        %v1437 = vsel %vm1431, %v1426, 0.0
        %v1438 = vadd.f32 %v1436, %v1437
        %v1439 = vsel %vm1431, %v1427, 0.0
        %v1440 = vadd.f32 %v1438, %v1439
        %v1441 = vsel %vm1431, %v1428, 0.0
        %v1442 = vadd.f32 %v1440, %v1441
        %v1443 = vsel %vm1431, %v1429, 0.0
        %v1444 = vadd.f32 %v1442, %v1443
        %v1445 = vsel %vm1431, %v1430, 0.0
        %v1446 = vadd.f32 %v1444, %v1445
        %v1447 = vrot.slane %v1446, 4
        %v1448 = vadd.f32 %v1446, %v1447
        %v1449 = vrot.slane %v1448, 2
        %v1450 = vadd.f32 %v1448, %v1449
        %v1451 = vrot.slane %v1450, 1
        %v1452 = vadd.f32 %v1450, %v1451
        %v1453 = vrcp.pop 64.0
        %v1454 = vmul.f32 %v1452, %v1453
        %v1455 = vld [vmem:[%s5] sm:$0xff]
        %v1456 = vld [vmem:[%s5 + $0x8] sm:$0xff]
        %v1457 = vld [vmem:[%s5 + $0x10] sm:$0xff]
        %v1458 = vld [vmem:[%s5 + $0x18] sm:$0xff]
        %v1459 = vld [vmem:[%s6] sm:$0x1]
        %v1461 = vsel %vm1431, %v1454, 0
        %1463 = vmatprep.subr.mxu0 0.0
        %1464 = vmatpush1.msra.mxu0 %v1455
        %1465 = vmatprep.subr.mxu0 0.0
        %1466 = vmatpush1.msra.mxu0 %v1456
        %1467 = vmatprep.subr.mxu0 0.0
        %1468 = vmatpush1.msra.mxu0 %v1457
        %1469 = vmatprep.subr.mxu0 0.0
        %1470 = vmatpush1.msra.mxu0 %v1458
        %1471 = vmatprep.subr.mxu0 0.0
        %1472 = vmatpush1.msra.mxu0 0.0
        %1473 = vmatprep.subr.mxu0 0.0
        %1474 = vmatpush1.msra.mxu0 0.0
        %1475 = vmatprep.subr.mxu0 0.0
        %1476 = vmatpush1.msra.mxu0 0.0
        %1477 = vmatprep.subr.mxu0 0.0
        %1478 = vmatpush1.msra.mxu0 0.0
        %1479 = vmatprep.subr.mxu0 0.0
        %1480 = vmatpush1.msra.mxu0 0.0
        %1481 = vmatprep.subr.mxu0 0.0
        %1482 = vmatpush1.msra.mxu0 0.0
        %1483 = vmatprep.subr.mxu0 0.0
        %1484 = vmatpush1.msra.mxu0 0.0
        %1485 = vmatprep.subr.mxu0 0.0
        %1486 = vmatpush1.msra.mxu0 0.0
        %1487 = vmatprep.subr.mxu0 0.0
        %1488 = vmatpush1.msra.mxu0 0.0
        %1489 = vmatprep.subr.mxu0 0.0
        %1490 = vmatpush1.msra.mxu0 0.0
        %1491 = vmatprep.subr.mxu0 0.0
        %1492 = vmatpush1.msra.mxu0 0.0
        %1493 = vmatprep.subr.mxu0 0.0
        %1494 = vmatpush1.msra.mxu0 0.0
        %1495 = vmatprep.subr.mxu0 0.0
        %1496 = vmatpush1.msra.mxu0 0.0
        %1497 = vmatprep.subr.mxu0 0.0
        %1498 = vmatpush1.msra.mxu0 0.0
        %1499 = vmatprep.subr.mxu0 0.0
        %1500 = vmatpush1.msra.mxu0 0.0
        %1501 = vmatprep.subr.mxu0 0.0
        %1502 = vmatpush1.msra.mxu0 0.0
        %1503 = vmatprep.subr.mxu0 0.0
        %1504 = vmatpush1.msra.mxu0 0.0
        %1505 = vmatprep.subr.mxu0 0.0
        %1506 = vmatpush1.msra.mxu0 0.0
        %1507 = vmatprep.subr.mxu0 0.0
        %1508 = vmatpush1.msra.mxu0 0.0
        %1509 = vmatprep.subr.mxu0 0.0
        %1510 = vmatpush1.msra.mxu0 0.0
        %1511 = vmatprep.subr.mxu0 0.0
        %1512 = vmatpush1.msra.mxu0 0.0
        %1513 = vmatprep.subr.mxu0 0.0
        %1514 = vmatpush1.msra.mxu0 0.0
        %1515 = vmatprep.subr.mxu0 0.0
        %1516 = vmatpush1.msra.mxu0 0.0
        %1517 = vmatprep.subr.mxu0 0.0
        %1518 = vmatpush1.msra.mxu0 0.0
        %1519 = vmatprep.subr.mxu0 0.0
        %1520 = vmatpush1.msra.mxu0 0.0
        %1521 = vmatprep.subr.mxu0 0.0
        %1522 = vmatpush1.msra.mxu0 0.0
        %1523 = vmatprep.subr.mxu0 0.0
        %1524 = vmatpush1.msra.mxu0 0.0
        %1525 = vmatprep.subr.mxu0 0.0
        %1526 = vmatpush1.msra.mxu0 0.0
        %1527 = vmatprep.mubr.f32.mxu0 0.0
        %1528 = vmatmul.mubr.f32.gmra.mrb[0].mxu0 %v1461
        %v1529 = vpop.f32.mrb[0].mxu0
        %v1530 = vadd.f32 %v1459, %v1529
        %v1531 = vpop.f32.mrb[0].mxu0
        %1532 = vdwg.mxu0
        %v1533 = vxor.u32 %v1530, 2147483648
        %v1534 = vmul.f32 %v1533, 1.442695
        %v1535 = vpow.pop %v1534
        %v1536 = vadd.f32 %v1535, 1.0
        %v1537 = vrcp.pop %v1536
        %v1538 = vmul.f32 1.0, %v1537
        %v1539 = vmul.f32 %v1530, %v1538
        %v1540 = vld [vmem:[%s7] sm:$0xff]
        %v1541 = vld [vmem:[%s8] sm:$0x1]
        %vm1542 = vcmask 64512
        %v1544 = vsel %vm1542, %v1539, 0
        %1546 = vmatprep.subr.mxu0 0.0
        %1547 = vmatpush1.msra.mxu0 %v1540
        %1548 = vmatprep.subr.mxu0 0.0
        %1549 = vmatpush1.msra.mxu0 0.0
        %1550 = vmatprep.subr.mxu0 0.0
        %1551 = vmatpush1.msra.mxu0 0.0
        %1552 = vmatprep.subr.mxu0 0.0
        %1553 = vmatpush1.msra.mxu0 0.0
        %1554 = vmatprep.subr.mxu0 0.0
        %1555 = vmatpush1.msra.mxu0 0.0
        %1556 = vmatprep.subr.mxu0 0.0
        %1557 = vmatpush1.msra.mxu0 0.0
        %1558 = vmatprep.subr.mxu0 0.0
        %1559 = vmatpush1.msra.mxu0 0.0
        %1560 = vmatprep.subr.mxu0 0.0
        %1561 = vmatpush1.msra.mxu0 0.0
        %1562 = vmatprep.subr.mxu0 0.0
        %1563 = vmatpush1.msra.mxu0 0.0
        %1564 = vmatprep.subr.mxu0 0.0
        %1565 = vmatpush1.msra.mxu0 0.0
        %1566 = vmatprep.subr.mxu0 0.0
        %1567 = vmatpush1.msra.mxu0 0.0
        %1568 = vmatprep.subr.mxu0 0.0
        %1569 = vmatpush1.msra.mxu0 0.0
        %1570 = vmatprep.subr.mxu0 0.0
        %1571 = vmatpush1.msra.mxu0 0.0
        %1572 = vmatprep.subr.mxu0 0.0
        %1573 = vmatpush1.msra.mxu0 0.0
        %1574 = vmatprep.subr.mxu0 0.0
        %1575 = vmatpush1.msra.mxu0 0.0
        %1576 = vmatprep.subr.mxu0 0.0
        %1577 = vmatpush1.msra.mxu0 0.0
        %1578 = vmatprep.subr.mxu0 0.0
        %1579 = vmatpush1.msra.mxu0 0.0
        %1580 = vmatprep.subr.mxu0 0.0
        %1581 = vmatpush1.msra.mxu0 0.0
        %1582 = vmatprep.subr.mxu0 0.0
        %1583 = vmatpush1.msra.mxu0 0.0
        %1584 = vmatprep.subr.mxu0 0.0
        %1585 = vmatpush1.msra.mxu0 0.0
        %1586 = vmatprep.subr.mxu0 0.0
        %1587 = vmatpush1.msra.mxu0 0.0
        %1588 = vmatprep.subr.mxu0 0.0
        %1589 = vmatpush1.msra.mxu0 0.0
        %1590 = vmatprep.subr.mxu0 0.0
        %1591 = vmatpush1.msra.mxu0 0.0
        %1592 = vmatprep.subr.mxu0 0.0
        %1593 = vmatpush1.msra.mxu0 0.0
        %1594 = vmatprep.subr.mxu0 0.0
        %1595 = vmatpush1.msra.mxu0 0.0
        %1596 = vmatprep.subr.mxu0 0.0
        %1597 = vmatpush1.msra.mxu0 0.0
        %1598 = vmatprep.subr.mxu0 0.0
        %1599 = vmatpush1.msra.mxu0 0.0
        %1600 = vmatprep.subr.mxu0 0.0
        %1601 = vmatpush1.msra.mxu0 0.0
        %1602 = vmatprep.subr.mxu0 0.0
        %1603 = vmatpush1.msra.mxu0 0.0
        %1604 = vmatprep.subr.mxu0 0.0
        %1605 = vmatpush1.msra.mxu0 0.0
        %1606 = vmatprep.subr.mxu0 0.0
        %1607 = vmatpush1.msra.mxu0 0.0
        %1608 = vmatprep.subr.mxu0 0.0
        %1609 = vmatpush1.msra.mxu0 0.0
        %1610 = vmatprep.mubr.f32.mxu0 0.0
        %1611 = vmatmul.mubr.f32.gmra.mrb[0].mxu0 %v1544
        %v1612 = vpop.f32.mrb[0].mxu0
        %v1613 = vadd.f32 %v1541, %v1612
        %v1614 = vpop.f32.mrb[0].mxu0
        %1615 = vdwg.mxu0
        %v1616 = vxor.u32 %v1613, 2147483648
        %v1617 = vmul.f32 %v1616, 1.442695
        %v1618 = vpow.pop %v1617
        %v1619 = vadd.f32 %v1618, 1.0
        %v1620 = vrcp.pop %v1619
        %v1621 = vmul.f32 1.0, %v1620
        %v1622 = vlaneseq
        %v1623 = vshrl.u32 %v1622, 7
        %v1624 = vsub.s32 0, %v1623
        %v1625 = vrot.slane %v1621, %v1624
        %v1626 = vmul.f32 %v1423, %v1625
        %v1627 = vmul.f32 %v1424, %v1625
        %v1628 = vmul.f32 %v1425, %v1625
        %v1629 = vmul.f32 %v1426, %v1625
        %v1630 = vmul.f32 %v1427, %v1625
        %v1631 = vmul.f32 %v1428, %v1625
        %v1632 = vmul.f32 %v1429, %v1625
        %v1633 = vmul.f32 %v1430, %v1625
        %v1634 = vld [vmem:[%s9] sm:$0xff]
        %v1635 = vld [vmem:[%s9 + $0x8] sm:$0xff]
        %v1636 = vld [vmem:[%s9 + $0x10] sm:$0xff]
        %v1637 = vld [vmem:[%s9 + $0x18] sm:$0xff]
        %v1638 = vld [vmem:[%s10] sm:$0x1]
        %v1640 = vlaneseq
        %v1641 = vshrl.u32 %v1640, 7
        %v1642 = vsub.s32 0, %v1641
        %v1643 = vrot.slane %v1638, %v1642
        %v1646 = vsel %vm1431, %v1626, 0
        %v1649 = vsel %vm1431, %v1627, 0
        %v1652 = vsel %vm1431, %v1628, 0
        %v1655 = vsel %vm1431, %v1629, 0
        %v1658 = vsel %vm1431, %v1630, 0
        %v1661 = vsel %vm1431, %v1631, 0
        %v1664 = vsel %vm1431, %v1632, 0
        %v1667 = vsel %vm1431, %v1633, 0
        %1669 = vmatprep.subr.mxu0 0.0
        %1670 = vmatpush1.msra.mxu0 %v1634
        %1671 = vmatprep.subr.mxu0 0.0
        %1672 = vmatpush1.msra.mxu0 %v1635
        %1673 = vmatprep.subr.mxu0 0.0
        %1674 = vmatpush1.msra.mxu0 %v1636
        %1675 = vmatprep.subr.mxu0 0.0
        %1676 = vmatpush1.msra.mxu0 %v1637
        %1677 = vmatprep.subr.mxu0 0.0
        %1678 = vmatpush1.msra.mxu0 0.0
        %1679 = vmatprep.subr.mxu0 0.0
        %1680 = vmatpush1.msra.mxu0 0.0
        %1681 = vmatprep.subr.mxu0 0.0
        %1682 = vmatpush1.msra.mxu0 0.0
        %1683 = vmatprep.subr.mxu0 0.0
        %1684 = vmatpush1.msra.mxu0 0.0
        %1685 = vmatprep.subr.mxu0 0.0
        %1686 = vmatpush1.msra.mxu0 0.0
        %1687 = vmatprep.subr.mxu0 0.0
        %1688 = vmatpush1.msra.mxu0 0.0
        %1689 = vmatprep.subr.mxu0 0.0
        %1690 = vmatpush1.msra.mxu0 0.0
        %1691 = vmatprep.subr.mxu0 0.0
        %1692 = vmatpush1.msra.mxu0 0.0
        %1693 = vmatprep.subr.mxu0 0.0
        %1694 = vmatpush1.msra.mxu0 0.0
        %1695 = vmatprep.subr.mxu0 0.0
        %1696 = vmatpush1.msra.mxu0 0.0
        %1697 = vmatprep.subr.mxu0 0.0
        %1698 = vmatpush1.msra.mxu0 0.0
        %1699 = vmatprep.subr.mxu0 0.0
        %1700 = vmatpush1.msra.mxu0 0.0
        %1701 = vmatprep.subr.mxu0 0.0
        %1702 = vmatpush1.msra.mxu0 0.0
        %1703 = vmatprep.subr.mxu0 0.0
        %1704 = vmatpush1.msra.mxu0 0.0
        %1705 = vmatprep.subr.mxu0 0.0
        %1706 = vmatpush1.msra.mxu0 0.0
        %1707 = vmatprep.subr.mxu0 0.0
        %1708 = vmatpush1.msra.mxu0 0.0
        %1709 = vmatprep.subr.mxu0 0.0
        %1710 = vmatpush1.msra.mxu0 0.0
        %1711 = vmatprep.subr.mxu0 0.0
        %1712 = vmatpush1.msra.mxu0 0.0
        %1713 = vmatprep.subr.mxu0 0.0
        %1714 = vmatpush1.msra.mxu0 0.0
        %1715 = vmatprep.subr.mxu0 0.0
        %1716 = vmatpush1.msra.mxu0 0.0
        %1717 = vmatprep.subr.mxu0 0.0
        %1718 = vmatpush1.msra.mxu0 0.0
        %1719 = vmatprep.subr.mxu0 0.0
        %1720 = vmatpush1.msra.mxu0 0.0
        %1721 = vmatprep.subr.mxu0 0.0
        %1722 = vmatpush1.msra.mxu0 0.0
        %1723 = vmatprep.subr.mxu0 0.0
        %1724 = vmatpush1.msra.mxu0 0.0
        %1725 = vmatprep.subr.mxu0 0.0
        %1726 = vmatpush1.msra.mxu0 0.0
        %1727 = vmatprep.subr.mxu0 0.0
        %1728 = vmatpush1.msra.mxu0 0.0
        %1729 = vmatprep.subr.mxu0 0.0
        %1730 = vmatpush1.msra.mxu0 0.0
        %1731 = vmatprep.subr.mxu0 0.0
        %1732 = vmatpush1.msra.mxu0 0.0
        %1733 = vmatprep.mubr.f32.mxu0 0.0
        %1734 = vmatmul.mubr.f32.gmra.mrb[0].mxu0 %v1646
        %v1735 = vpop.f32.mrb[0].mxu0
        %v1736 = vadd.f32 %v1643, %v1735
        %v1737 = vpop.f32.mrb[0].mxu0
        %1738 = vmatprep.mubr.f32.mxu0 0.0
        %1739 = vmatmul.mubr.f32.gmra.mrb[0].mxu0 %v1649
        %v1740 = vpop.f32.mrb[0].mxu0
        %v1741 = vadd.f32 %v1643, %v1740
        %v1742 = vpop.f32.mrb[0].mxu0
        %1743 = vmatprep.mubr.f32.mxu0 0.0
        %1744 = vmatmul.mubr.f32.gmra.mrb[0].mxu0 %v1652
        %v1745 = vpop.f32.mrb[0].mxu0
        %v1746 = vadd.f32 %v1643, %v1745
        %v1747 = vpop.f32.mrb[0].mxu0
        %1748 = vmatprep.mubr.f32.mxu0 0.0
        %1749 = vmatmul.mubr.f32.gmra.mrb[0].mxu0 %v1655
        %v1750 = vpop.f32.mrb[0].mxu0
        %v1751 = vadd.f32 %v1643, %v1750
        %v1752 = vpop.f32.mrb[0].mxu0
        %1753 = vmatprep.mubr.f32.mxu0 0.0
        %1754 = vmatmul.mubr.f32.gmra.mrb[0].mxu0 %v1658
        %v1755 = vpop.f32.mrb[0].mxu0
        %v1756 = vadd.f32 %v1643, %v1755
        %v1757 = vpop.f32.mrb[0].mxu0
        %1758 = vmatprep.mubr.f32.mxu0 0.0
        %1759 = vmatmul.mubr.f32.gmra.mrb[0].mxu0 %v1661
        %v1760 = vpop.f32.mrb[0].mxu0
        %v1761 = vadd.f32 %v1643, %v1760
        %v1762 = vpop.f32.mrb[0].mxu0
        %1763 = vmatprep.mubr.f32.mxu0 0.0
        %1764 = vmatmul.mubr.f32.gmra.mrb[0].mxu0 %v1664
        %v1765 = vpop.f32.mrb[0].mxu0
        %v1766 = vadd.f32 %v1643, %v1765
        %v1767 = vpop.f32.mrb[0].mxu0
        %1768 = vmatprep.mubr.f32.mxu0 0.0
        %1769 = vmatmul.mubr.f32.gmra.mrb[0].mxu0 %v1667
        %v1770 = vpop.f32.mrb[0].mxu0
        %v1771 = vadd.f32 %v1643, %v1770
        %v1772 = vpop.f32.mrb[0].mxu0
        %1773 = vdwg.mxu0
        %v1774 = vxor.u32 %v1736, 2147483648
        %v1775 = vxor.u32 %v1741, 2147483648
        %v1776 = vxor.u32 %v1746, 2147483648
        %v1777 = vxor.u32 %v1751, 2147483648
        %v1778 = vxor.u32 %v1756, 2147483648
        %v1779 = vxor.u32 %v1761, 2147483648
        %v1780 = vxor.u32 %v1766, 2147483648
        %v1781 = vxor.u32 %v1771, 2147483648
        %v1782 = vmul.f32 %v1774, 1.442695
        %v1783 = vpow.pop %v1782
        %v1784 = vmul.f32 %v1775, 1.442695
        %v1785 = vpow.pop %v1784
        %v1786 = vmul.f32 %v1776, 1.442695
        %v1787 = vpow.pop %v1786
        %v1788 = vmul.f32 %v1777, 1.442695
        %v1789 = vpow.pop %v1788
        %v1790 = vmul.f32 %v1778, 1.442695
        %v1791 = vpow.pop %v1790
        %v1792 = vmul.f32 %v1779, 1.442695
        %v1793 = vpow.pop %v1792
        %v1794 = vmul.f32 %v1780, 1.442695
        %v1795 = vpow.pop %v1794
        %v1796 = vmul.f32 %v1781, 1.442695
        %v1797 = vpow.pop %v1796
        %v1798 = vadd.f32 %v1783, 1.0
        %v1799 = vadd.f32 %v1785, 1.0
        %v1800 = vadd.f32 %v1787, 1.0
        %v1801 = vadd.f32 %v1789, 1.0
        %v1802 = vadd.f32 %v1791, 1.0
        %v1803 = vadd.f32 %v1793, 1.0
        %v1804 = vadd.f32 %v1795, 1.0
        %v1805 = vadd.f32 %v1797, 1.0
        %v1806 = vrcp.pop %v1798
        %v1807 = vmul.f32 1.0, %v1806
        %v1808 = vrcp.pop %v1799
        %v1809 = vmul.f32 1.0, %v1808
        %v1810 = vrcp.pop %v1800
        %v1811 = vmul.f32 1.0, %v1810
        %v1812 = vrcp.pop %v1801
        %v1813 = vmul.f32 1.0, %v1812
        %v1814 = vrcp.pop %v1802
        %v1815 = vmul.f32 1.0, %v1814
        %v1816 = vrcp.pop %v1803
        %v1817 = vmul.f32 1.0, %v1816
        %v1818 = vrcp.pop %v1804
        %v1819 = vmul.f32 1.0, %v1818
        %v1820 = vrcp.pop %v1805
        %v1821 = vmul.f32 1.0, %v1820
        %v1822 = vmul.f32 %v1736, %v1807
        %v1823 = vmul.f32 %v1741, %v1809
        %v1824 = vmul.f32 %v1746, %v1811
        %v1825 = vmul.f32 %v1751, %v1813
        %v1826 = vmul.f32 %v1756, %v1815
        %v1827 = vmul.f32 %v1761, %v1817
        %v1828 = vmul.f32 %v1766, %v1819
        %v1829 = vmul.f32 %v1771, %v1821
        %vm1830 = vcmask 523264
        %v1831 = vsel %vm1830, %v1822, 0.0
        %v1832 = vsel %vm1830, %v1823, 0.0
        %v1833 = vadd.f32 %v1831, %v1832
        %v1834 = vsel %vm1830, %v1824, 0.0
        %v1835 = vadd.f32 %v1833, %v1834
        %v1836 = vsel %vm1830, %v1825, 0.0
        %v1837 = vadd.f32 %v1835, %v1836
        %v1838 = vsel %vm1830, %v1826, 0.0
        %v1839 = vadd.f32 %v1837, %v1838
        %v1840 = vsel %vm1830, %v1827, 0.0
        %v1841 = vadd.f32 %v1839, %v1840
        %v1842 = vsel %vm1830, %v1828, 0.0
        %v1843 = vadd.f32 %v1841, %v1842
        %v1844 = vsel %vm1830, %v1829, 0.0
        %v1845 = vadd.f32 %v1843, %v1844
        %v1846 = vrot.slane %v1845, 4
        %v1847 = vadd.f32 %v1845, %v1846
        %v1848 = vrot.slane %v1847, 2
        %v1849 = vadd.f32 %v1847, %v1848
        %v1850 = vrot.slane %v1849, 1
        %v1851 = vadd.f32 %v1849, %v1850
        %v1852 = vmul.f32 %v1851, %v1453
        %v1853 = vld [vmem:[%s11] sm:$0xff]
        %v1854 = vld [vmem:[%s11 + $0x8] sm:$0xff]
        %v1855 = vld [vmem:[%s11 + $0x10] sm:$0xff]
        %v1856 = vld [vmem:[%s11 + $0x18] sm:$0xff]
        %v1857 = vld [vmem:[%s11 + $0x20] sm:$0xff]
        %v1858 = vld [vmem:[%s11 + $0x28] sm:$0xff]
        %v1859 = vld [vmem:[%s11 + $0x30] sm:$0xff]
        %v1860 = vld [vmem:[%s11 + $0x38] sm:$0xff]
        %v1861 = vld [vmem:[%s12] sm:$0x1]
        %v1863 = vsel %vm1830, %v1852, 0
        %1865 = vmatprep.subr.mxu0 0.0
        %1866 = vmatpush1.msra.mxu0 %v1853
        %1867 = vmatprep.subr.mxu0 0.0
        %1868 = vmatpush1.msra.mxu0 %v1854
        %1869 = vmatprep.subr.mxu0 0.0
        %1870 = vmatpush1.msra.mxu0 %v1855
        %1871 = vmatprep.subr.mxu0 0.0
        %1872 = vmatpush1.msra.mxu0 %v1856
        %1873 = vmatprep.subr.mxu0 0.0
        %1874 = vmatpush1.msra.mxu0 %v1857
        %1875 = vmatprep.subr.mxu0 0.0
        %1876 = vmatpush1.msra.mxu0 %v1858
        %1877 = vmatprep.subr.mxu0 0.0
        %1878 = vmatpush1.msra.mxu0 %v1859
        %1879 = vmatprep.subr.mxu0 0.0
        %1880 = vmatpush1.msra.mxu0 %v1860
        %1881 = vmatprep.subr.mxu0 0.0
        %1882 = vmatpush1.msra.mxu0 0.0
        %1883 = vmatprep.subr.mxu0 0.0
        %1884 = vmatpush1.msra.mxu0 0.0
        %1885 = vmatprep.subr.mxu0 0.0
        %1886 = vmatpush1.msra.mxu0 0.0
        %1887 = vmatprep.subr.mxu0 0.0
        %1888 = vmatpush1.msra.mxu0 0.0
        %1889 = vmatprep.subr.mxu0 0.0
        %1890 = vmatpush1.msra.mxu0 0.0
        %1891 = vmatprep.subr.mxu0 0.0
        %1892 = vmatpush1.msra.mxu0 0.0
        %1893 = vmatprep.subr.mxu0 0.0
        %1894 = vmatpush1.msra.mxu0 0.0
        %1895 = vmatprep.subr.mxu0 0.0
        %1896 = vmatpush1.msra.mxu0 0.0
        %1897 = vmatprep.subr.mxu0 0.0
        %1898 = vmatpush1.msra.mxu0 0.0
        %1899 = vmatprep.subr.mxu0 0.0
        %1900 = vmatpush1.msra.mxu0 0.0
        %1901 = vmatprep.subr.mxu0 0.0
        %1902 = vmatpush1.msra.mxu0 0.0
        %1903 = vmatprep.subr.mxu0 0.0
        %1904 = vmatpush1.msra.mxu0 0.0
        %1905 = vmatprep.subr.mxu0 0.0
        %1906 = vmatpush1.msra.mxu0 0.0
        %1907 = vmatprep.subr.mxu0 0.0
        %1908 = vmatpush1.msra.mxu0 0.0
        %1909 = vmatprep.subr.mxu0 0.0
        %1910 = vmatpush1.msra.mxu0 0.0
        %1911 = vmatprep.subr.mxu0 0.0
        %1912 = vmatpush1.msra.mxu0 0.0
        %1913 = vmatprep.subr.mxu0 0.0
        %1914 = vmatpush1.msra.mxu0 0.0
        %1915 = vmatprep.subr.mxu0 0.0
        %1916 = vmatpush1.msra.mxu0 0.0
        %1917 = vmatprep.subr.mxu0 0.0
        %1918 = vmatpush1.msra.mxu0 0.0
        %1919 = vmatprep.subr.mxu0 0.0
        %1920 = vmatpush1.msra.mxu0 0.0
        %1921 = vmatprep.subr.mxu0 0.0
        %1922 = vmatpush1.msra.mxu0 0.0
        %1923 = vmatprep.subr.mxu0 0.0
        %1924 = vmatpush1.msra.mxu0 0.0
        %1925 = vmatprep.subr.mxu0 0.0
        %1926 = vmatpush1.msra.mxu0 0.0
        %1927 = vmatprep.subr.mxu0 0.0
        %1928 = vmatpush1.msra.mxu0 0.0
        %1929 = vmatprep.mubr.f32.mxu0 0.0
        %1930 = vmatmul.mubr.f32.gmra.mrb[0].mxu0 %v1863
        %v1931 = vpop.f32.mrb[0].mxu0
        %v1932 = vadd.f32 %v1861, %v1931
        %v1933 = vpop.f32.mrb[0].mxu0
        %1934 = vdwg.mxu0
        %vm1935 = vcmask 32768
        %1936 = vst.msk [vmem:[%s432] sm:$0x1] %vm1935, %v1932
        %s1937 = sand.u32 %s313, 1
        %s1938 = scalar_lea.sflag [#allocation3], %s1937
        %s1939 = sand.u32 %s313, 1
        %s1940 = scalar_lea.vmem [#allocation2], %s1939
        // Predicated region
        $region73: #{custom_efficientnet_forward.1} parent=71 // pred_check
          %p1941 = pneg %p323
        $region74: #{custom_efficientnet_forward.1} parent=71 // pred_check_branch
          %1943 = sbr.rel (%p1941) target = $region76
        $region75: #{custom_efficientnet_forward.1} parent=71 // pred_region
          %s1945 = ssub.s32 16, 16
          %1946 = vsyncadd %s1938, %s1945
          %s1947 = smul.addr %s27, 16
          %s1948 = scalar_lea.hbm %s13, %s1947
          %s1950 = sshll.u32 %s1940, 4
          %s1951 = int_to_ptr.vmem [resolvable:$true] %s1950
          %1953 = dma.vmem_to_hbm [thread:$0]  %s1951, 16, %s1948, %s1938
        $region76: #{custom_efficientnet_forward.1} parent=71 // pred_fallthru
          _
      $region72: #{custom_efficientnet_forward.1} parent=5 // pred_fallthru
        _
      %p1954 = scmp.le.s32.totalorder 2, %s22
      // Predicated region
      $region77: #{custom_efficientnet_forward.1} parent=5 // pred_check
        %p1955 = pneg %p1954
      $region78: #{custom_efficientnet_forward.1} parent=5 // pred_check_branch
        %1957 = sbr.rel (%p1955) target = $region80
      $region79: #{custom_efficientnet_forward.1} parent=5 // pred_region
        %s1958 = ssub.s32 %s22, 2
        // Predicated region
        $region81: #{custom_efficientnet_forward.1} parent=79 // pred_check
          %p1959 = pneg %p329
        $region82: #{custom_efficientnet_forward.1} parent=79 // pred_check_branch
          %1961 = sbr.rel (%p1959) target = $region84
        $region83: #{custom_efficientnet_forward.1} parent=79 // pred_region
          %s1962 = sand.u32 %s314, 1
          %s1963 = scalar_lea.sflag [#allocation3], %s1962
          %s1964 = sand.u32 %s314, 1
          %s1965 = scalar_lea.vmem [#allocation2], %s1964
          %1966 = dma.done %s1963, 16
        $region84: #{custom_efficientnet_forward.1} parent=79 // pred_fallthru
          _
      $region80: #{custom_efficientnet_forward.1} parent=5 // pred_fallthru
        _
    $region6: #{custom_efficientnet_forward.1} parent=1 // loop_footer
      %s26 = sadd.s32 1, %s22
    $region7: #{custom_efficientnet_forward.1} parent=1 // loop_footer_branch
      %21 = sbr.rel target = $region3
    $region8: #{custom_efficientnet_forward.1} parent=1 // loop_exit
      _
    %1967 = vsyncpa [#allocation3], 1
    %s1968 = scalar_lea.sflag [#allocation3], 1
    %1969 = vsyncpa %s1968, 1

</llo_original>
